<compile_context>
chip_gen: v7x
topology: tpu7x:2x2x1
jax: 0.10.0
libtpu: 0.0.40
codegen_flags: <defaults>
</compile_context>

<pallas_src>
import math

import jax
import jax.numpy as jnp
from jax.experimental import pallas as pl
from jax.experimental.pallas import tpu as pltpu

NEG_SLOPE = 0.2       # nn.LeakyReLU(0.2)
BN_EPS = 1e-5         # nn.BatchNorm1d default eps
USE_BF16_MXU = True   # bf16 MXU operands / f32 accumulation (perf review item)


# ---------------------------------------------------------------------------
# Fused Pallas kernel: [BatchNorm1d] -> [LeakyReLU] -> matmul + bias [+ residual]
# ---------------------------------------------------------------------------
def _make_fc_kernel(apply_bn, apply_leaky, has_residual, use_bf16):
  def kernel(*refs):
    it = iter(refs)
    x_ref = next(it)
    g_ref = next(it) if apply_bn else None
    be_ref = next(it) if apply_bn else None
    w_ref = next(it)
    b_ref = next(it)
    r_ref = next(it) if has_residual else None
    o_ref = next(it)

    a = x_ref[...].astype(jnp.float32)
    if apply_bn:
      # torch train-mode BatchNorm1d: batch mean + biased batch variance.
      mean = jnp.mean(a, axis=0, keepdims=True)
      var = jnp.mean(jnp.square(a - mean), axis=0, keepdims=True)
      a = (a - mean) * jax.lax.rsqrt(var + BN_EPS)
      a = a * g_ref[...] + be_ref[...]
    if apply_leaky:
      a = jnp.where(a >= 0, a, NEG_SLOPE * a)

    w = w_ref[...]
    if use_bf16:                       # bf16 operands, f32 accumulation on MXU
      a = a.astype(jnp.bfloat16)
      w = w.astype(jnp.bfloat16)
    acc = jnp.dot(a, w, preferred_element_type=jnp.float32)
    acc = acc + b_ref[...]
    if has_residual:                   # fused resblock residual add
      acc = acc + r_ref[...]
    o_ref[...] = acc.astype(o_ref.dtype)
  return kernel


def fc_layer(x, w, b, gamma=None, beta=None, residual=None, apply_leaky=False,
             use_bf16=USE_BF16_MXU):
  """out = leaky(bn(x)) @ w + b (+ residual), with bn/leaky optional.

  x:(M,K)  w:(K,N)  b:(1,N)  gamma/beta:(1,K)  residual:(M,N) -> (M,N) float32
  """
  M, K = x.shape
  Kw, N = w.shape
  assert K == Kw
  assert K % 128 == 0 and N % 128 == 0, "feature dims must be lane-aligned"

  # >=2 lane-dense N blocks whenever possible so v7x's two TCs both get work.
  tn = N // 2 if (N % 256 == 0) else N
  grid = (N // tn,)
  apply_bn = gamma is not None

  in_specs = [pl.BlockSpec((M, K), lambda j: (0, 0))]
  args = [x]
  if apply_bn:
    in_specs += [pl.BlockSpec((1, K), lambda j: (0, 0)),
                 pl.BlockSpec((1, K), lambda j: (0, 0))]
    args += [gamma, beta]
  in_specs += [pl.BlockSpec((K, tn), lambda j: (0, j)),
               pl.BlockSpec((1, tn), lambda j: (0, j))]
  args += [w, b]
  if residual is not None:
    in_specs.append(pl.BlockSpec((M, tn), lambda j: (0, j)))
    args.append(residual)

  return pl.pallas_call(
      _make_fc_kernel(apply_bn, apply_leaky, residual is not None, use_bf16),
      out_shape=jax.ShapeDtypeStruct((M, N), jnp.float32),
      grid=grid,
      in_specs=in_specs,
      out_specs=pl.BlockSpec((M, tn), lambda j: (0, j)),
      compiler_params=pltpu.CompilerParams(
          dimension_semantics=("parallel",)),
  )(*args)


# ---------------------------------------------------------------------------
# Phi parameters + forward
# ---------------------------------------------------------------------------
def init_phi_params(key, num_in=128, hidden=256, num_out=128, nblocks=4):
  keys = list(jax.random.split(key, 2 * (2 * nblocks + 2)))
  kit = iter(keys)

  def linear(kin, kout):
    bound = 1.0 / math.sqrt(kin)            # torch nn.Linear default init range
    w = jax.random.uniform(next(kit), (kin, kout), jnp.float32, -bound, bound)
    b = jax.random.uniform(next(kit), (1, kout), jnp.float32, -bound, bound)
    return w, b

  params = {}
  params["first_w"], params["first_b"] = linear(num_in, hidden)
  blocks = []
  for _ in range(nblocks):
    w1, b1 = linear(hidden, hidden)
    w2, b2 = linear(hidden, hidden)
    blocks.append(dict(
        g1=jnp.ones((1, hidden), jnp.float32),
        be1=jnp.zeros((1, hidden), jnp.float32), w1=w1, b1=b1,
        g2=jnp.ones((1, hidden), jnp.float32),
        be2=jnp.zeros((1, hidden), jnp.float32), w2=w2, b2=b2,
    ))
  params["blocks"] = blocks
  params["last_w"], params["last_b"] = linear(hidden, num_out)
  return params


def phi_forward(params, x):
  x = x.astype(jnp.float32)
  # first_layer: plain Linear (no BN, no activation before it)
  h = fc_layer(x, params["first_w"], params["first_b"])
  # main_layers: nblocks x [BN -> LeakyReLU -> Linear, BN -> LeakyReLU -> Linear, out += x]
  for blk in params["blocks"]:
    r = h
    h1 = fc_layer(h, blk["w1"], blk["b1"],
                  gamma=blk["g1"], beta=blk["be1"], apply_leaky=True)
    h = fc_layer(h1, blk["w2"], blk["b2"],
                 gamma=blk["g2"], beta=blk["be2"], apply_leaky=True, residual=r)
  # last_layer: LeakyReLU -> Linear (leaky fused on the A operand)
  return fc_layer(h, params["last_w"], params["last_b"], apply_leaky=True)


# ---------------------------------------------------------------------------
# Pure-JAX reference mirroring the kernel numerics (bf16 operands / f32 acc)
# ---------------------------------------------------------------------------
def _ref_forward(params, x, use_bf16=USE_BF16_MXU):
  def fc(a, w, b, g=None, be=None, r=None, leaky=False):
    a = a.astype(jnp.float32)
    if g is not None:
      mean = jnp.mean(a, axis=0, keepdims=True)
      var = jnp.mean(jnp.square(a - mean), axis=0, keepdims=True)
      a = (a - mean) * jax.lax.rsqrt(var + BN_EPS)
      a = a * g + be
    if leaky:
      a = jnp.where(a >= 0, a, NEG_SLOPE * a)
    if use_bf16:
      a = a.astype(jnp.bfloat16)
      w = w.astype(jnp.bfloat16)
    out = jnp.dot(a, w, preferred_element_type=jnp.float32) + b
    if r is not None:
      out = out + r
    return out

  h = fc(x.astype(jnp.float32), params["first_w"], params["first_b"])
  for blk in params["blocks"]:
    r = h
    h1 = fc(h, blk["w1"], blk["b1"], blk["g1"], blk["be1"], leaky=True)
    h = fc(h1, blk["w2"], blk["b2"], blk["g2"], blk["be2"], r=r, leaky=True)
  return fc(h, params["last_w"], params["last_b"], leaky=True)


if __name__ == "__main__":
  key = jax.random.PRNGKey(0)
  pkey, xkey = jax.random.split(key)

  # Small, lane-aligned demo config consistent with Phi(nblocks, hidden, num_in, num_out)
  B, NUM_IN, HIDDEN, NUM_OUT, NBLOCKS = 8, 128, 256, 128, 4
  params = init_phi_params(pkey, num_in=NUM_IN, hidden=HIDDEN,
                           num_out=NUM_OUT, nblocks=NBLOCKS)
  x = jax.random.normal(xkey, (B, NUM_IN), dtype=jnp.float32)

  fwd = jax.jit(phi_forward)
  y = jax.block_until_ready(fwd(params, x))
  assert y.shape == (B, NUM_OUT), y.shape
  assert bool(jnp.all(jnp.isfinite(y)))

  # Correctness check against a pure-JAX reference using the same numerics.
  y_ref = jax.jit(_ref_forward)(params, x)
  max_err = float(jnp.max(jnp.abs(y - y_ref)))
  assert max_err < 0.1, f"mismatch vs reference: max_abs_err={max_err}"

  print("KERNEL_OK")
</pallas_src>

<mosaic_0001>
module attributes {stable_mosaic.version = 11 : i64} {
  func.func @kernel(%arg0: i32, %arg1: memref<8x128xf32, #tpu.memory_space<vmem>>, %arg2: memref<128x128xf32, #tpu.memory_space<vmem>>, %arg3: memref<1x128xf32, #tpu.memory_space<vmem>>, %arg4: memref<8x128xf32, #tpu.memory_space<vmem>>) attributes {dimension_semantics = [#tpu.dimension_semantics<parallel>], iteration_bounds = array<i64: 2>, scalar_prefetch = 0 : i64, scratch_operands = 0 : i64, tpu.core_type = #tpu.core_type<tc>, window_params = [{pipeline_mode = #tpu.pipeline_mode<synchronous>, transform_indices = @transform_0, window_bounds = array<i64: 8, 128>}, {transform_indices = @transform_1, window_bounds = array<i64: 128, 128>}, {transform_indices = @transform_2, window_bounds = array<i64: 1, 128>}, {transform_indices = @transform_3, window_bounds = array<i64: 8, 128>}]} {
    %c0 = arith.constant 0 : index
    %c0_0 = arith.constant 0 : index
    %0 = vector.load %arg1[%c0, %c0_0] : memref<8x128xf32, #tpu.memory_space<vmem>>, vector<8x128xf32>
    %c0_1 = arith.constant 0 : index
    %c0_2 = arith.constant 0 : index
    %1 = vector.load %arg2[%c0_1, %c0_2] : memref<128x128xf32, #tpu.memory_space<vmem>>, vector<128x128xf32>
    %2 = arith.truncf %0 : vector<8x128xf32> to vector<8x128xbf16>
    %3 = arith.truncf %1 : vector<128x128xf32> to vector<128x128xbf16>
    %cst = arith.constant dense<0.000000e+00> : vector<8x128xf32>
    %4 = tpu.matmul %2, %3, %cst {dimension_numbers = #tpu.dot_dimension_numbers<[1], [0], [0], [1], [0, 0, 1, 1], [], []>} : vector<8x128xbf16>, vector<128x128xbf16>, vector<8x128xf32> -> vector<8x128xf32>
    %c0_3 = arith.constant 0 : index
    %c0_4 = arith.constant 0 : index
    %5 = vector.load %arg3[%c0_3, %c0_4] : memref<1x128xf32, #tpu.memory_space<vmem>>, vector<1x128xf32>
    %6 = vector.broadcast %5 : vector<1x128xf32> to vector<8x128xf32>
    %7 = arith.addf %4, %6 : vector<8x128xf32>
    %c0_5 = arith.constant 0 : index
    %c0_6 = arith.constant 0 : index
    %8 = vector.load %arg4[%c0_5, %c0_6] : memref<8x128xf32, #tpu.memory_space<vmem>>, vector<8x128xf32>
    tpu.vector_store %arg4[%c0_5, %c0_6], %7 {strides = array<i32>} : memref<8x128xf32, #tpu.memory_space<vmem>>, vector<8x128xf32>,
    return
  }
  func.func @transform_0(%arg0: i32) -> (i32, i32) {
    %c0_i32 = arith.constant 0 : i32
    %c0_i32_0 = arith.constant 0 : i32
    %c0_i32_1 = arith.constant 0 : i32
    return %c0_i32, %c0_i32_0 : i32, i32
  }
  func.func @transform_1(%arg0: i32) -> (i32, i32) {
    %c0_i32 = arith.constant 0 : i32
    %c0_i32_0 = arith.constant 0 : i32
    return %c0_i32, %arg0 : i32, i32
  }
  func.func @transform_2(%arg0: i32) -> (i32, i32) {
    %c0_i32 = arith.constant 0 : i32
    %c0_i32_0 = arith.constant 0 : i32
    return %c0_i32, %arg0 : i32, i32
  }
  func.func @transform_3(%arg0: i32) -> (i32, i32) {
    %c0_i32 = arith.constant 0 : i32
    %c0_i32_0 = arith.constant 0 : i32
    return %c0_i32, %arg0 : i32, i32
  }
}

module attributes {stable_mosaic.version = 11 : i64} {
  func.func @kernel(%arg0: i32, %arg1: memref<8x256xf32, #tpu.memory_space<vmem>>, %arg2: memref<1x256xf32, #tpu.memory_space<vmem>>, %arg3: memref<1x256xf32, #tpu.memory_space<vmem>>, %arg4: memref<256x128xf32, #tpu.memory_space<vmem>>, %arg5: memref<1x128xf32, #tpu.memory_space<vmem>>, %arg6: memref<8x128xf32, #tpu.memory_space<vmem>>) attributes {dimension_semantics = [#tpu.dimension_semantics<parallel>], iteration_bounds = array<i64: 2>, scalar_prefetch = 0 : i64, scratch_operands = 0 : i64, tpu.core_type = #tpu.core_type<tc>, window_params = [{pipeline_mode = #tpu.pipeline_mode<synchronous>, transform_indices = @transform_0, window_bounds = array<i64: 8, 256>}, {pipeline_mode = #tpu.pipeline_mode<synchronous>, transform_indices = @transform_1, window_bounds = array<i64: 1, 256>}, {pipeline_mode = #tpu.pipeline_mode<synchronous>, transform_indices = @transform_2, window_bounds = array<i64: 1, 256>}, {transform_indices = @transform_3, window_bounds = array<i64: 256, 128>}, {transform_indices = @transform_4, window_bounds = array<i64: 1, 128>}, {transform_indices = @transform_5, window_bounds = array<i64: 8, 128>}]} {
    %c0 = arith.constant 0 : index
    %c0_0 = arith.constant 0 : index
    %0 = vector.load %arg1[%c0, %c0_0] : memref<8x256xf32, #tpu.memory_space<vmem>>, vector<8x256xf32>
    %cst = arith.constant dense<0.000000e+00> : vector<256xf32>
    %1 = vector.multi_reduction <add>, %0, %cst [0] : vector<8x256xf32> to vector<256xf32>
    %2 = vector.shape_cast %1 : vector<256xf32> to vector<1x256xf32>
    %cst_1 = arith.constant 8.000000e+00 : f32
    %3 = vector.broadcast %cst_1 : f32 to vector<1x256xf32>
    %4 = arith.divf %2, %3 : vector<1x256xf32>
    %5 = vector.broadcast %4 : vector<1x256xf32> to vector<8x256xf32>
    %6 = arith.subf %0, %5 : vector<8x256xf32>
    %7 = arith.mulf %6, %6 : vector<8x256xf32>
    %cst_2 = arith.constant dense<0.000000e+00> : vector<256xf32>
    %8 = vector.multi_reduction <add>, %7, %cst_2 [0] : vector<8x256xf32> to vector<256xf32>
    %9 = vector.shape_cast %8 : vector<256xf32> to vector<1x256xf32>
    %cst_3 = arith.constant 8.000000e+00 : f32
    %10 = vector.broadcast %cst_3 : f32 to vector<1x256xf32>
    %11 = arith.divf %9, %10 : vector<1x256xf32>
    %12 = vector.broadcast %4 : vector<1x256xf32> to vector<8x256xf32>
    %13 = arith.subf %0, %12 : vector<8x256xf32>
    %cst_4 = arith.constant 9.99999974E-6 : f32
    %14 = vector.broadcast %cst_4 : f32 to vector<1x256xf32>
    %15 = arith.addf %11, %14 : vector<1x256xf32>
    %16 = math.rsqrt %15 : vector<1x256xf32>
    %17 = vector.broadcast %16 : vector<1x256xf32> to vector<8x256xf32>
    %18 = arith.mulf %13, %17 : vector<8x256xf32>
    %c0_5 = arith.constant 0 : index
    %c0_6 = arith.constant 0 : index
    %19 = vector.load %arg2[%c0_5, %c0_6] : memref<1x256xf32, #tpu.memory_space<vmem>>, vector<1x256xf32>
    %20 = vector.broadcast %19 : vector<1x256xf32> to vector<8x256xf32>
    %21 = arith.mulf %18, %20 : vector<8x256xf32>
    %c0_7 = arith.constant 0 : index
    %c0_8 = arith.constant 0 : index
    %22 = vector.load %arg3[%c0_7, %c0_8] : memref<1x256xf32, #tpu.memory_space<vmem>>, vector<1x256xf32>
    %23 = vector.broadcast %22 : vector<1x256xf32> to vector<8x256xf32>
    %24 = arith.addf %21, %23 : vector<8x256xf32>
    %cst_9 = arith.constant 0.000000e+00 : f32
    %25 = vector.broadcast %cst_9 : f32 to vector<8x256xf32>
    %26 = arith.cmpf oge, %24, %25 : vector<8x256xf32>
    %cst_10 = arith.constant 2.000000e-01 : f32
    %27 = vector.broadcast %cst_10 : f32 to vector<8x256xf32>
    %28 = arith.mulf %27, %24 : vector<8x256xf32>
    %29 = arith.select %26, %24, %28 : vector<8x256xi1>, vector<8x256xf32>
    %c0_11 = arith.constant 0 : index
    %c0_12 = arith.constant 0 : index
    %30 = vector.load %arg4[%c0_11, %c0_12] : memref<256x128xf32, #tpu.memory_space<vmem>>, vector<256x128xf32>
    %31 = arith.truncf %29 : vector<8x256xf32> to vector<8x256xbf16>
    %32 = arith.truncf %30 : vector<256x128xf32> to vector<256x128xbf16>
    %cst_13 = arith.constant dense<0.000000e+00> : vector<8x128xf32>
    %33 = tpu.matmul %31, %32, %cst_13 {dimension_numbers = #tpu.dot_dimension_numbers<[1], [0], [0], [1], [0, 0, 1, 1], [], []>} : vector<8x256xbf16>, vector<256x128xbf16>, vector<8x128xf32> -> vector<8x128xf32>
    %c0_14 = arith.constant 0 : index
    %c0_15 = arith.constant 0 : index
    %34 = vector.load %arg5[%c0_14, %c0_15] : memref<1x128xf32, #tpu.memory_space<vmem>>, vector<1x128xf32>
    %35 = vector.broadcast %34 : vector<1x128xf32> to vector<8x128xf32>
    %36 = arith.addf %33, %35 : vector<8x128xf32>
    %c0_16 = arith.constant 0 : index
    %c0_17 = arith.constant 0 : index
    %37 = vector.load %arg6[%c0_16, %c0_17] : memref<8x128xf32, #tpu.memory_space<vmem>>, vector<8x128xf32>
    tpu.vector_store %arg6[%c0_16, %c0_17], %36 {strides = array<i32>} : memref<8x128xf32, #tpu.memory_space<vmem>>, vector<8x128xf32>,
    return
  }
  func.func @transform_0(%arg0: i32) -> (i32, i32) {
    %c0_i32 = arith.constant 0 : i32
    %c0_i32_0 = arith.constant 0 : i32
    %c0_i32_1 = arith.constant 0 : i32
    return %c0_i32, %c0_i32_0 : i32, i32
  }
  func.func @transform_1(%arg0: i32) -> (i32, i32) {
    %c0_i32 = arith.constant 0 : i32
    %c0_i32_0 = arith.constant 0 : i32
    %c0_i32_1 = arith.constant 0 : i32
    return %c0_i32, %c0_i32_0 : i32, i32
  }
  func.func @transform_2(%arg0: i32) -> (i32, i32) {
    %c0_i32 = arith.constant 0 : i32
    %c0_i32_0 = arith.constant 0 : i32
    %c0_i32_1 = arith.constant 0 : i32
    return %c0_i32, %c0_i32_0 : i32, i32
  }
  func.func @transform_3(%arg0: i32) -> (i32, i32) {
    %c0_i32 = arith.constant 0 : i32
    %c0_i32_0 = arith.constant 0 : i32
    return %c0_i32, %arg0 : i32, i32
  }
  func.func @transform_4(%arg0: i32) -> (i32, i32) {
    %c0_i32 = arith.constant 0 : i32
    %c0_i32_0 = arith.constant 0 : i32
    return %c0_i32, %arg0 : i32, i32
  }
  func.func @transform_5(%arg0: i32) -> (i32, i32) {
    %c0_i32 = arith.constant 0 : i32
    %c0_i32_0 = arith.constant 0 : i32
    return %c0_i32, %arg0 : i32, i32
  }
}

module attributes {stable_mosaic.version = 11 : i64} {
  func.func @kernel(%arg0: i32, %arg1: memref<8x256xf32, #tpu.memory_space<vmem>>, %arg2: memref<1x256xf32, #tpu.memory_space<vmem>>, %arg3: memref<1x256xf32, #tpu.memory_space<vmem>>, %arg4: memref<256x128xf32, #tpu.memory_space<vmem>>, %arg5: memref<1x128xf32, #tpu.memory_space<vmem>>, %arg6: memref<8x128xf32, #tpu.memory_space<vmem>>) attributes {dimension_semantics = [#tpu.dimension_semantics<parallel>], iteration_bounds = array<i64: 2>, scalar_prefetch = 0 : i64, scratch_operands = 0 : i64, tpu.core_type = #tpu.core_type<tc>, window_params = [{pipeline_mode = #tpu.pipeline_mode<synchronous>, transform_indices = @transform_0, window_bounds = array<i64: 8, 256>}, {pipeline_mode = #tpu.pipeline_mode<synchronous>, transform_indices = @transform_1, window_bounds = array<i64: 1, 256>}, {pipeline_mode = #tpu.pipeline_mode<synchronous>, transform_indices = @transform_2, window_bounds = array<i64: 1, 256>}, {transform_indices = @transform_3, window_bounds = array<i64: 256, 128>}, {transform_indices = @transform_4, window_bounds = array<i64: 1, 128>}, {transform_indices = @transform_5, window_bounds = array<i64: 8, 128>}]} {
    %c0 = arith.constant 0 : index
    %c0_0 = arith.constant 0 : index
    %0 = vector.load %arg1[%c0, %c0_0] : memref<8x256xf32, #tpu.memory_space<vmem>>, vector<8x256xf32>
    %cst = arith.constant dense<0.000000e+00> : vector<256xf32>
    %1 = vector.multi_reduction <add>, %0, %cst [0] : vector<8x256xf32> to vector<256xf32>
    %2 = vector.shape_cast %1 : vector<256xf32> to vector<1x256xf32>
    %cst_1 = arith.constant 8.000000e+00 : f32
    %3 = vector.broadcast %cst_1 : f32 to vector<1x256xf32>
    %4 = arith.divf %2, %3 : vector<1x256xf32>
    %5 = vector.broadcast %4 : vector<1x256xf32> to vector<8x256xf32>
    %6 = arith.subf %0, %5 : vector<8x256xf32>
    %7 = arith.mulf %6, %6 : vector<8x256xf32>
    %cst_2 = arith.constant dense<0.000000e+00> : vector<256xf32>
    %8 = vector.multi_reduction <add>, %7, %cst_2 [0] : vector<8x256xf32> to vector<256xf32>
    %9 = vector.shape_cast %8 : vector<256xf32> to vector<1x256xf32>
    %cst_3 = arith.constant 8.000000e+00 : f32
    %10 = vector.broadcast %cst_3 : f32 to vector<1x256xf32>
    %11 = arith.divf %9, %10 : vector<1x256xf32>
    %12 = vector.broadcast %4 : vector<1x256xf32> to vector<8x256xf32>
    %13 = arith.subf %0, %12 : vector<8x256xf32>
    %cst_4 = arith.constant 9.99999974E-6 : f32
    %14 = vector.broadcast %cst_4 : f32 to vector<1x256xf32>
    %15 = arith.addf %11, %14 : vector<1x256xf32>
    %16 = math.rsqrt %15 : vector<1x256xf32>
    %17 = vector.broadcast %16 : vector<1x256xf32> to vector<8x256xf32>
    %18 = arith.mulf %13, %17 : vector<8x256xf32>
    %c0_5 = arith.constant 0 : index
    %c0_6 = arith.constant 0 : index
    %19 = vector.load %arg2[%c0_5, %c0_6] : memref<1x256xf32, #tpu.memory_space<vmem>>, vector<1x256xf32>
    %20 = vector.broadcast %19 : vector<1x256xf32> to vector<8x256xf32>
    %21 = arith.mulf %18, %20 : vector<8x256xf32>
    %c0_7 = arith.constant 0 : index
    %c0_8 = arith.constant 0 : index
    %22 = vector.load %arg3[%c0_7, %c0_8] : memref<1x256xf32, #tpu.memory_space<vmem>>, vector<1x256xf32>
    %23 = vector.broadcast %22 : vector<1x256xf32> to vector<8x256xf32>
    %24 = arith.addf %21, %23 : vector<8x256xf32>
    %cst_9 = arith.constant 0.000000e+00 : f32
    %25 = vector.broadcast %cst_9 : f32 to vector<8x256xf32>
    %26 = arith.cmpf oge, %24, %25 : vector<8x256xf32>
    %cst_10 = arith.constant 2.000000e-01 : f32
    %27 = vector.broadcast %cst_10 : f32 to vector<8x256xf32>
    %28 = arith.mulf %27, %24 : vector<8x256xf32>
    %29 = arith.select %26, %24, %28 : vector<8x256xi1>, vector<8x256xf32>
    %c0_11 = arith.constant 0 : index
    %c0_12 = arith.constant 0 : index
    %30 = vector.load %arg4[%c0_11, %c0_12] : memref<256x128xf32, #tpu.memory_space<vmem>>, vector<256x128xf32>
    %31 = arith.truncf %29 : vector<8x256xf32> to vector<8x256xbf16>
    %32 = arith.truncf %30 : vector<256x128xf32> to vector<256x128xbf16>
    %cst_13 = arith.constant dense<0.000000e+00> : vector<8x128xf32>
    %33 = tpu.matmul %31, %32, %cst_13 {dimension_numbers = #tpu.dot_dimension_numbers<[1], [0], [0], [1], [0, 0, 1, 1], [], []>} : vector<8x256xbf16>, vector<256x128xbf16>, vector<8x128xf32> -> vector<8x128xf32>
    %c0_14 = arith.constant 0 : index
    %c0_15 = arith.constant 0 : index
    %34 = vector.load %arg5[%c0_14, %c0_15] : memref<1x128xf32, #tpu.memory_space<vmem>>, vector<1x128xf32>
    %35 = vector.broadcast %34 : vector<1x128xf32> to vector<8x128xf32>
    %36 = arith.addf %33, %35 : vector<8x128xf32>
    %c0_16 = arith.constant 0 : index
    %c0_17 = arith.constant 0 : index
    %37 = vector.load %arg6[%c0_16, %c0_17] : memref<8x128xf32, #tpu.memory_space<vmem>>, vector<8x128xf32>
    tpu.vector_store %arg6[%c0_16, %c0_17], %36 {strides = array<i32>} : memref<8x128xf32, #tpu.memory_space<vmem>>, vector<8x128xf32>,
    return
  }
  func.func @transform_0(%arg0: i32) -> (i32, i32) {
    %c0_i32 = arith.constant 0 : i32
    %c0_i32_0 = arith.constant 0 : i32
    %c0_i32_1 = arith.constant 0 : i32
    return %c0_i32, %c0_i32_0 : i32, i32
  }
  func.func @transform_1(%arg0: i32) -> (i32, i32) {
    %c0_i32 = arith.constant 0 : i32
    %c0_i32_0 = arith.constant 0 : i32
    %c0_i32_1 = arith.constant 0 : i32
    return %c0_i32, %c0_i32_0 : i32, i32
  }
  func.func @transform_2(%arg0: i32) -> (i32, i32) {
    %c0_i32 = arith.constant 0 : i32
    %c0_i32_0 = arith.constant 0 : i32
    %c0_i32_1 = arith.constant 0 : i32
    return %c0_i32, %c0_i32_0 : i32, i32
  }
  func.func @transform_3(%arg0: i32) -> (i32, i32) {
    %c0_i32 = arith.constant 0 : i32
    %c0_i32_0 = arith.constant 0 : i32
    return %c0_i32, %arg0 : i32, i32
  }
  func.func @transform_4(%arg0: i32) -> (i32, i32) {
    %c0_i32 = arith.constant 0 : i32
    %c0_i32_0 = arith.constant 0 : i32
    return %c0_i32, %arg0 : i32, i32
  }
  func.func @transform_5(%arg0: i32) -> (i32, i32) {
    %c0_i32 = arith.constant 0 : i32
    %c0_i32_0 = arith.constant 0 : i32
    return %c0_i32, %arg0 : i32, i32
  }
}

module attributes {stable_mosaic.version = 11 : i64} {
  func.func @kernel(%arg0: i32, %arg1: memref<8x256xf32, #tpu.memory_space<vmem>>, %arg2: memref<1x256xf32, #tpu.memory_space<vmem>>, %arg3: memref<1x256xf32, #tpu.memory_space<vmem>>, %arg4: memref<256x128xf32, #tpu.memory_space<vmem>>, %arg5: memref<1x128xf32, #tpu.memory_space<vmem>>, %arg6: memref<8x128xf32, #tpu.memory_space<vmem>>, %arg7: memref<8x128xf32, #tpu.memory_space<vmem>>) attributes {dimension_semantics = [#tpu.dimension_semantics<parallel>], iteration_bounds = array<i64: 2>, scalar_prefetch = 0 : i64, scratch_operands = 0 : i64, tpu.core_type = #tpu.core_type<tc>, window_params = [{pipeline_mode = #tpu.pipeline_mode<synchronous>, transform_indices = @transform_0, window_bounds = array<i64: 8, 256>}, {pipeline_mode = #tpu.pipeline_mode<synchronous>, transform_indices = @transform_1, window_bounds = array<i64: 1, 256>}, {pipeline_mode = #tpu.pipeline_mode<synchronous>, transform_indices = @transform_2, window_bounds = array<i64: 1, 256>}, {transform_indices = @transform_3, window_bounds = array<i64: 256, 128>}, {transform_indices = @transform_4, window_bounds = array<i64: 1, 128>}, {transform_indices = @transform_5, window_bounds = array<i64: 8, 128>}, {transform_indices = @transform_6, window_bounds = array<i64: 8, 128>}]} {
    %c0 = arith.constant 0 : index
    %c0_0 = arith.constant 0 : index
    %0 = vector.load %arg1[%c0, %c0_0] : memref<8x256xf32, #tpu.memory_space<vmem>>, vector<8x256xf32>
    %cst = arith.constant dense<0.000000e+00> : vector<256xf32>
    %1 = vector.multi_reduction <add>, %0, %cst [0] : vector<8x256xf32> to vector<256xf32>
    %2 = vector.shape_cast %1 : vector<256xf32> to vector<1x256xf32>
    %cst_1 = arith.constant 8.000000e+00 : f32
    %3 = vector.broadcast %cst_1 : f32 to vector<1x256xf32>
    %4 = arith.divf %2, %3 : vector<1x256xf32>
    %5 = vector.broadcast %4 : vector<1x256xf32> to vector<8x256xf32>
    %6 = arith.subf %0, %5 : vector<8x256xf32>
    %7 = arith.mulf %6, %6 : vector<8x256xf32>
    %cst_2 = arith.constant dense<0.000000e+00> : vector<256xf32>
    %8 = vector.multi_reduction <add>, %7, %cst_2 [0] : vector<8x256xf32> to vector<256xf32>
    %9 = vector.shape_cast %8 : vector<256xf32> to vector<1x256xf32>
    %cst_3 = arith.constant 8.000000e+00 : f32
    %10 = vector.broadcast %cst_3 : f32 to vector<1x256xf32>
    %11 = arith.divf %9, %10 : vector<1x256xf32>
    %12 = vector.broadcast %4 : vector<1x256xf32> to vector<8x256xf32>
    %13 = arith.subf %0, %12 : vector<8x256xf32>
    %cst_4 = arith.constant 9.99999974E-6 : f32
    %14 = vector.broadcast %cst_4 : f32 to vector<1x256xf32>
    %15 = arith.addf %11, %14 : vector<1x256xf32>
    %16 = math.rsqrt %15 : vector<1x256xf32>
    %17 = vector.broadcast %16 : vector<1x256xf32> to vector<8x256xf32>
    %18 = arith.mulf %13, %17 : vector<8x256xf32>
    %c0_5 = arith.constant 0 : index
    %c0_6 = arith.constant 0 : index
    %19 = vector.load %arg2[%c0_5, %c0_6] : memref<1x256xf32, #tpu.memory_space<vmem>>, vector<1x256xf32>
    %20 = vector.broadcast %19 : vector<1x256xf32> to vector<8x256xf32>
    %21 = arith.mulf %18, %20 : vector<8x256xf32>
    %c0_7 = arith.constant 0 : index
    %c0_8 = arith.constant 0 : index
    %22 = vector.load %arg3[%c0_7, %c0_8] : memref<1x256xf32, #tpu.memory_space<vmem>>, vector<1x256xf32>
    %23 = vector.broadcast %22 : vector<1x256xf32> to vector<8x256xf32>
    %24 = arith.addf %21, %23 : vector<8x256xf32>
    %cst_9 = arith.constant 0.000000e+00 : f32
    %25 = vector.broadcast %cst_9 : f32 to vector<8x256xf32>
    %26 = arith.cmpf oge, %24, %25 : vector<8x256xf32>
    %cst_10 = arith.constant 2.000000e-01 : f32
    %27 = vector.broadcast %cst_10 : f32 to vector<8x256xf32>
    %28 = arith.mulf %27, %24 : vector<8x256xf32>
    %29 = arith.select %26, %24, %28 : vector<8x256xi1>, vector<8x256xf32>
    %c0_11 = arith.constant 0 : index
    %c0_12 = arith.constant 0 : index
    %30 = vector.load %arg4[%c0_11, %c0_12] : memref<256x128xf32, #tpu.memory_space<vmem>>, vector<256x128xf32>
    %31 = arith.truncf %29 : vector<8x256xf32> to vector<8x256xbf16>
    %32 = arith.truncf %30 : vector<256x128xf32> to vector<256x128xbf16>
    %cst_13 = arith.constant dense<0.000000e+00> : vector<8x128xf32>
    %33 = tpu.matmul %31, %32, %cst_13 {dimension_numbers = #tpu.dot_dimension_numbers<[1], [0], [0], [1], [0, 0, 1, 1], [], []>} : vector<8x256xbf16>, vector<256x128xbf16>, vector<8x128xf32> -> vector<8x128xf32>
    %c0_14 = arith.constant 0 : index
    %c0_15 = arith.constant 0 : index
    %34 = vector.load %arg5[%c0_14, %c0_15] : memref<1x128xf32, #tpu.memory_space<vmem>>, vector<1x128xf32>
    %35 = vector.broadcast %34 : vector<1x128xf32> to vector<8x128xf32>
    %36 = arith.addf %33, %35 : vector<8x128xf32>
    %c0_16 = arith.constant 0 : index
    %c0_17 = arith.constant 0 : index
    %37 = vector.load %arg6[%c0_16, %c0_17] : memref<8x128xf32, #tpu.memory_space<vmem>>, vector<8x128xf32>
    %38 = arith.addf %36, %37 : vector<8x128xf32>
    %c0_18 = arith.constant 0 : index
    %c0_19 = arith.constant 0 : index
    %39 = vector.load %arg7[%c0_18, %c0_19] : memref<8x128xf32, #tpu.memory_space<vmem>>, vector<8x128xf32>
    tpu.vector_store %arg7[%c0_18, %c0_19], %38 {strides = array<i32>} : memref<8x128xf32, #tpu.memory_space<vmem>>, vector<8x128xf32>,
    return
  }
  func.func @transform_0(%arg0: i32) -> (i32, i32) {
    %c0_i32 = arith.constant 0 : i32
    %c0_i32_0 = arith.constant 0 : i32
    %c0_i32_1 = arith.constant 0 : i32
    return %c0_i32, %c0_i32_0 : i32, i32
  }
  func.func @transform_1(%arg0: i32) -> (i32, i32) {
    %c0_i32 = arith.constant 0 : i32
    %c0_i32_0 = arith.constant 0 : i32
    %c0_i32_1 = arith.constant 0 : i32
    return %c0_i32, %c0_i32_0 : i32, i32
  }
  func.func @transform_2(%arg0: i32) -> (i32, i32) {
    %c0_i32 = arith.constant 0 : i32
    %c0_i32_0 = arith.constant 0 : i32
    %c0_i32_1 = arith.constant 0 : i32
    return %c0_i32, %c0_i32_0 : i32, i32
  }
  func.func @transform_3(%arg0: i32) -> (i32, i32) {
    %c0_i32 = arith.constant 0 : i32
    %c0_i32_0 = arith.constant 0 : i32
    return %c0_i32, %arg0 : i32, i32
  }
  func.func @transform_4(%arg0: i32) -> (i32, i32) {
    %c0_i32 = arith.constant 0 : i32
    %c0_i32_0 = arith.constant 0 : i32
    return %c0_i32, %arg0 : i32, i32
  }
  func.func @transform_5(%arg0: i32) -> (i32, i32) {
    %c0_i32 = arith.constant 0 : i32
    %c0_i32_0 = arith.constant 0 : i32
    return %c0_i32, %arg0 : i32, i32
  }
  func.func @transform_6(%arg0: i32) -> (i32, i32) {
    %c0_i32 = arith.constant 0 : i32
    %c0_i32_0 = arith.constant 0 : i32
    return %c0_i32, %arg0 : i32, i32
  }
}

module attributes {stable_mosaic.version = 11 : i64} {
  func.func @kernel(%arg0: i32, %arg1: memref<8x256xf32, #tpu.memory_space<vmem>>, %arg2: memref<256x128xf32, #tpu.memory_space<vmem>>, %arg3: memref<1x128xf32, #tpu.memory_space<vmem>>, %arg4: memref<8x128xf32, #tpu.memory_space<vmem>>) attributes {dimension_semantics = [#tpu.dimension_semantics<parallel>], iteration_bounds = array<i64: 1>, scalar_prefetch = 0 : i64, scratch_operands = 0 : i64, tpu.core_type = #tpu.core_type<tc>, window_params = [{pipeline_mode = #tpu.pipeline_mode<synchronous>, transform_indices = @transform_0, window_bounds = array<i64: 8, 256>}, {transform_indices = @transform_1, window_bounds = array<i64: 256, 128>}, {transform_indices = @transform_2, window_bounds = array<i64: 1, 128>}, {transform_indices = @transform_3, window_bounds = array<i64: 8, 128>}]} {
    %c0 = arith.constant 0 : index
    %c0_0 = arith.constant 0 : index
    %0 = vector.load %arg1[%c0, %c0_0] : memref<8x256xf32, #tpu.memory_space<vmem>>, vector<8x256xf32>
    %cst = arith.constant 0.000000e+00 : f32
    %1 = vector.broadcast %cst : f32 to vector<8x256xf32>
    %2 = arith.cmpf oge, %0, %1 : vector<8x256xf32>
    %cst_1 = arith.constant 2.000000e-01 : f32
    %3 = vector.broadcast %cst_1 : f32 to vector<8x256xf32>
    %4 = arith.mulf %3, %0 : vector<8x256xf32>
    %5 = arith.select %2, %0, %4 : vector<8x256xi1>, vector<8x256xf32>
    %c0_2 = arith.constant 0 : index
    %c0_3 = arith.constant 0 : index
    %6 = vector.load %arg2[%c0_2, %c0_3] : memref<256x128xf32, #tpu.memory_space<vmem>>, vector<256x128xf32>
    %7 = arith.truncf %5 : vector<8x256xf32> to vector<8x256xbf16>
    %8 = arith.truncf %6 : vector<256x128xf32> to vector<256x128xbf16>
    %cst_4 = arith.constant dense<0.000000e+00> : vector<8x128xf32>
    %9 = tpu.matmul %7, %8, %cst_4 {dimension_numbers = #tpu.dot_dimension_numbers<[1], [0], [0], [1], [0, 0, 1, 1], [], []>} : vector<8x256xbf16>, vector<256x128xbf16>, vector<8x128xf32> -> vector<8x128xf32>
    %c0_5 = arith.constant 0 : index
    %c0_6 = arith.constant 0 : index
    %10 = vector.load %arg3[%c0_5, %c0_6] : memref<1x128xf32, #tpu.memory_space<vmem>>, vector<1x128xf32>
    %11 = vector.broadcast %10 : vector<1x128xf32> to vector<8x128xf32>
    %12 = arith.addf %9, %11 : vector<8x128xf32>
    %c0_7 = arith.constant 0 : index
    %c0_8 = arith.constant 0 : index
    %13 = vector.load %arg4[%c0_7, %c0_8] : memref<8x128xf32, #tpu.memory_space<vmem>>, vector<8x128xf32>
    tpu.vector_store %arg4[%c0_7, %c0_8], %12 {strides = array<i32>} : memref<8x128xf32, #tpu.memory_space<vmem>>, vector<8x128xf32>,
    return
  }
  func.func @transform_0(%arg0: i32) -> (i32, i32) {
    %c0_i32 = arith.constant 0 : i32
    %c0_i32_0 = arith.constant 0 : i32
    %c0_i32_1 = arith.constant 0 : i32
    return %c0_i32, %c0_i32_0 : i32, i32
  }
  func.func @transform_1(%arg0: i32) -> (i32, i32) {
    %c0_i32 = arith.constant 0 : i32
    %c0_i32_0 = arith.constant 0 : i32
    return %c0_i32, %arg0 : i32, i32
  }
  func.func @transform_2(%arg0: i32) -> (i32, i32) {
    %c0_i32 = arith.constant 0 : i32
    %c0_i32_0 = arith.constant 0 : i32
    return %c0_i32, %arg0 : i32, i32
  }
  func.func @transform_3(%arg0: i32) -> (i32, i32) {
    %c0_i32 = arith.constant 0 : i32
    %c0_i32_0 = arith.constant 0 : i32
    return %c0_i32, %arg0 : i32, i32
  }
}

</mosaic_0001>

<llo_original>
// kernel: phi_forward.10
$region0: #{phi_forward.10}
  #allocation0 [shape = 'u32[]', space=smem, size = 0x4, offset = 0x4, fixed_abs, tag = 'smem constant byte address 0x4 - core index']
  #allocation1 [shape = 'u32[144,128]{1,0:T(1,128)}', space=vmem, size = 0x12000, scoped, tag = 'internal scratch']
  %s0 = inlined_call_operand.vmem [shape: f32[8,128], index: 0, kind: input, shape index: {}]
  %s1 = inlined_call_operand.hbm [shape: f32[128,256], index: 1, kind: input, shape index: {}]
  %s2 = inlined_call_operand.vmem [shape: f32[1,256], index: 2, kind: input, shape index: {}]
  %s3 = inlined_call_operand.vmem [shape: f32[8,256], index: 3, kind: output, shape index: {}]
  %s4 = sld [smem:[#allocation0]]
  $region49: #{phi_forward.10} parent=0
    _
  %s6 = ssub.s32 1, %s4
  %s7 = scalar_select 0, %s6, %s4
  $region1: #{phi_forward.10} parent=0
    #allocation2 [shape = 'u8[131072]{0}', space=vmem, size = 0x20000, scoped, tag = 'input window, operand 1']
    #allocation3 [shape = 's32[2]{0}', space=sflag, size = 0x8, scoped, tag = 'scoped memory for phi_forward.10']
    %8 = vsyncpa [#allocation3], 0
    %s9 = scalar_lea.sflag [#allocation3], 1
    %10 = vsyncpa %s9, 0
    loop: start=0, step=1, limit=4
    $region2: #{phi_forward.10} parent=1 // loop_pre_header
      _
    $region3: #{phi_forward.10} parent=1 // loop_header
      %s12 = sphi 0, %s16
      %p13 = scmp.ge.s32.totalorder %s12, 4
      %s20 = sphi 0, %s20
      %s22 = sphi 0, %s20
      %s23 = sphi 0, %s22
      %s37 = sphi 0, %s23
      %s43 = sphi 0, %s45
      %s46 = sphi 0, %s43
      %s47 = sphi 0, %s46
      %s63 = sphi 0, %s47
      %s69 = sphi 0, %s71
      %s72 = sphi 0, %s69
      %s73 = sphi 0, %s72
      %s89 = sphi 0, %s73
      %s95 = sphi 0, %s97
      %s98 = sphi 0, %s95
      %s99 = sphi 0, %s98
      %s115 = sphi 0, %s99
    $region4: #{phi_forward.10} parent=1 // loop_header_branch
      %15 = sbr.rel (%p13) target = $region8
    $region5: #{phi_forward.10} parent=1 // loop_body
      %s17 = ssub.s32 %s12, 1
      %s18 = ssub.s32 %s12, 2
      %s19 = sadd.s32 %s12, 1
      %s21 = sadd.s32 %s20, 1
      %p24 = scmp.eq.s32.totalorder %s12, 1
      %p25 = scmp.ne.s32.totalorder %s20, %s22
      %p26 = scmp.eq.s32.totalorder %s12, 0
      %p27 = por %p25, %p26
      %p28 = scmp.ne.s32.totalorder %s20, %s22
      %p29 = scmp.eq.s32.totalorder %s17, 1
      %p30 = por %p28, %p29
      %p31 = scmp.ne.s32.totalorder %s22, %s23
      %p32 = scmp.eq.s32.totalorder %s17, 0
      %p33 = por %p31, %p32
      %p34 = scmp.ne.s32.totalorder %s22, %s23
      %p35 = scmp.eq.s32.totalorder %s18, 1
      %p36 = por %p34, %p35
      %p38 = scmp.ne.s32.totalorder %s23, %s37
      %p39 = scmp.eq.s32.totalorder %s18, 0
      %p40 = por %p38, %p39
      %s41 = ssub.s32 %s12, %s19
      %p42 = scmp.eq.s32.totalorder %s41, 0
      %s44 = sadd.s32 %s43, 1
      %s45 = scalar_select %p42, %s43, %s44
      %p48 = pneg %p42
      %p49 = scmp.eq.s32.totalorder %s12, 1
      %p50 = por %p48, %p49
      %p51 = scmp.ne.s32.totalorder %s43, %s46
      %p52 = scmp.eq.s32.totalorder %s12, 0
      %p53 = por %p51, %p52
      %p54 = scmp.ne.s32.totalorder %s43, %s46
      %p55 = scmp.eq.s32.totalorder %s17, 1
      %p56 = por %p54, %p55
      %p57 = scmp.ne.s32.totalorder %s46, %s47
      %p58 = scmp.eq.s32.totalorder %s17, 0
      %p59 = por %p57, %p58
      %p60 = scmp.ne.s32.totalorder %s46, %s47
      %p61 = scmp.eq.s32.totalorder %s18, 1
      %p62 = por %p60, %p61
      %p64 = scmp.ne.s32.totalorder %s47, %s63
      %p65 = scmp.eq.s32.totalorder %s18, 0
      %p66 = por %p64, %p65
      %s67 = ssub.s32 %s12, %s19
      %p68 = scmp.eq.s32.totalorder %s67, 0
      %s70 = sadd.s32 %s69, 1
      %s71 = scalar_select %p68, %s69, %s70
      %p74 = pneg %p68
      %p75 = scmp.eq.s32.totalorder %s12, 1
      %p76 = por %p74, %p75
      %p77 = scmp.ne.s32.totalorder %s69, %s72
      %p78 = scmp.eq.s32.totalorder %s12, 0
      %p79 = por %p77, %p78
      %p80 = scmp.ne.s32.totalorder %s69, %s72
      %p81 = scmp.eq.s32.totalorder %s17, 1
      %p82 = por %p80, %p81
      %p83 = scmp.ne.s32.totalorder %s72, %s73
      %p84 = scmp.eq.s32.totalorder %s17, 0
      %p85 = por %p83, %p84
      %p86 = scmp.ne.s32.totalorder %s72, %s73
      %p87 = scmp.eq.s32.totalorder %s18, 1
      %p88 = por %p86, %p87
      %p90 = scmp.ne.s32.totalorder %s73, %s89
      %p91 = scmp.eq.s32.totalorder %s18, 0
      %p92 = por %p90, %p91
      %s93 = ssub.s32 %s12, %s19
      %p94 = scmp.eq.s32.totalorder %s93, 0
      %s96 = sadd.s32 %s95, 1
      %s97 = scalar_select %p94, %s95, %s96
      %p100 = pneg %p94
      %p101 = scmp.eq.s32.totalorder %s12, 1
      %p102 = por %p100, %p101
      %p103 = scmp.ne.s32.totalorder %s95, %s98
      %p104 = scmp.eq.s32.totalorder %s12, 0
      %p105 = por %p103, %p104
      %p106 = scmp.ne.s32.totalorder %s95, %s98
      %p107 = scmp.eq.s32.totalorder %s17, 1
      %p108 = por %p106, %p107
      %p109 = scmp.ne.s32.totalorder %s98, %s99
      %p110 = scmp.eq.s32.totalorder %s17, 0
      %p111 = por %p109, %p110
      %p112 = scmp.ne.s32.totalorder %s98, %s99
      %p113 = scmp.eq.s32.totalorder %s18, 1
      %p114 = por %p112, %p113
      %p116 = scmp.ne.s32.totalorder %s99, %s115
      %p117 = scmp.eq.s32.totalorder %s18, 0
      %p118 = por %p116, %p117
      %p119 = scmp.le.s32.totalorder 1, %s12
      %p120 = scmp.lt.s32.totalorder %s12, 3
      %p121 = pnand %p119, %p120
      %p122 = pneg %p121
      // Predicated region
      $region9: #{phi_forward.10} parent=5 // pred_check
        _
      $region10: #{phi_forward.10} parent=5 // pred_check_branch
        %124 = sbr.rel (%p121) target = $region12
      $region11: #{phi_forward.10} parent=5 // pred_region
        %s125 = ssub.s32 %s12, 1
        // Predicated region
        $region13: #{phi_forward.10} parent=11 // pred_check
          %p126 = pneg %p33
        $region14: #{phi_forward.10} parent=11 // pred_check_branch
          %128 = sbr.rel (%p126) target = $region16
        $region15: #{phi_forward.10} parent=11 // pred_region
          _
        $region16: #{phi_forward.10} parent=11 // pred_fallthru
          _
      $region12: #{phi_forward.10} parent=5 // pred_fallthru
        _
      %p129 = scmp.lt.s32.totalorder %s12, 2
      // Predicated region
      $region17: #{phi_forward.10} parent=5 // pred_check
        %p130 = pneg %p129
      $region18: #{phi_forward.10} parent=5 // pred_check_branch
        %132 = sbr.rel (%p130) target = $region20
      $region19: #{phi_forward.10} parent=5 // pred_region
        // Predicated region
        $region21: #{phi_forward.10} parent=19 // pred_check
          %p133 = pneg %p53
        $region22: #{phi_forward.10} parent=19 // pred_check_branch
          %135 = sbr.rel (%p133) target = $region24
        $region23: #{phi_forward.10} parent=19 // pred_region
          %s136 = sand.u32 %s43, 1
          %s137 = scalar_lea.sflag [#allocation3], %s136
          %s138 = sand.u32 %s43, 1
          %s139 = smul.addr %s138, 128
          %s140 = scalar_lea.vmem [#allocation2], %s139
          %s142 = ssub.s32 2048, 2048
          %143 = vsyncadd %s137, %s142
          %s144 = smul.addr %s12, 128
          %s145 = scalar_lea.hbm %s1, %s144
          %s146 = sshll.u32 %s140, 4
          %s147 = int_to_ptr.vmem [resolvable:$true] %s146
          %152 = dma.hbm_to_vmem [thread:$0]  %s145, 2048, %s147, %s137, 256, 128, 8
        $region24: #{phi_forward.10} parent=19 // pred_fallthru
          _
        // Predicated region
        $region25: #{phi_forward.10} parent=19 // pred_check
          %p153 = pneg %p79
        $region26: #{phi_forward.10} parent=19 // pred_check_branch
          %155 = sbr.rel (%p153) target = $region28
        $region27: #{phi_forward.10} parent=19 // pred_region
          %p156 = scmp.lt.s32.totalorder %s12, 1
          %s157 = scalar_select %p156, %s12, 1
          %s158 = scalar_lea.vmem %s2, %s157
        $region28: #{phi_forward.10} parent=19 // pred_fallthru
          _
      $region20: #{phi_forward.10} parent=5 // pred_fallthru
        _
      %p159 = scmp.le.s32.totalorder 1, %s12
      %p160 = scmp.lt.s32.totalorder %s12, 3
      %p161 = pnand %p159, %p160
      %p162 = pneg %p161
      // Predicated region
      $region29: #{phi_forward.10} parent=5 // pred_check
        _
      $region30: #{phi_forward.10} parent=5 // pred_check_branch
        %164 = sbr.rel (%p161) target = $region32
      $region31: #{phi_forward.10} parent=5 // pred_region
        %s165 = ssub.s32 %s12, 1
        %s166 = sand.u32 %s46, 1
        %s167 = scalar_lea.sflag [#allocation3], %s166
        %s168 = sand.u32 %s46, 1
        %s169 = smul.addr %s168, 128
        %s170 = scalar_lea.vmem [#allocation2], %s169
        // Predicated region
        $region33: #{phi_forward.10} parent=31 // pred_check
          %p171 = pneg %p59
        $region34: #{phi_forward.10} parent=31 // pred_check_branch
          %173 = sbr.rel (%p171) target = $region36
        $region35: #{phi_forward.10} parent=31 // pred_region
          %174 = dma.done %s167, 2048
        $region36: #{phi_forward.10} parent=31 // pred_fallthru
          _
        %p175 = pneg %p33
        %p176 = pneg %p30
        %s177 = sand.u32 %s46, 1
        %s178 = scalar_lea.sflag [#allocation3], %s177
        %s179 = sand.u32 %s46, 1
        %s180 = smul.addr %s179, 128
        %s181 = scalar_lea.vmem [#allocation2], %s180
        %p182 = pneg %p59
        %p183 = pneg %p56
        %p184 = scmp.lt.s32.totalorder %s17, 1
        %s185 = scalar_select %p184, %s17, 1
        %s186 = scalar_lea.vmem %s2, %s185
        %p187 = pneg %p85
        %p188 = pneg %p82
        %p189 = pneg %p111
        %p190 = pneg %p108
        %p191 = scmp.lt.s32.totalorder %s17, 1
        %s192 = scalar_select %p191, %s17, 1
        %s193 = smul.addr %s192, 8
        %s194 = scalar_lea.vmem %s3, %s193
        %p195 = scmp.lt.s32.totalorder %s17, 1
        %s196 = scalar_select %p195, %s17, 1
        %s197 = scalar_lea.vmem %s2, %s196
        %p198 = scmp.lt.s32.totalorder %s17, 1
        %s199 = scalar_select %p198, %s17, 1
        %s200 = smul.addr %s199, 8
        %s201 = scalar_lea.vmem %s3, %s200
        %v203 = vld [vmem:[%s0] sm:$0xff]
        %v204 = vld [vmem:[%s170] sm:$0xff]
        %v205 = vld [vmem:[%s170 + $0x8] sm:$0xff]
        %v206 = vld [vmem:[%s170 + $0x10] sm:$0xff]
        %v207 = vld [vmem:[%s170 + $0x18] sm:$0xff]
        %v208 = vld [vmem:[%s170 + $0x20] sm:$0xff]
        %v209 = vld [vmem:[%s170 + $0x28] sm:$0xff]
        %v210 = vld [vmem:[%s170 + $0x30] sm:$0xff]
        %v211 = vld [vmem:[%s170 + $0x38] sm:$0xff]
        %v212 = vld [vmem:[%s170 + $0x40] sm:$0xff]
        %v213 = vld [vmem:[%s170 + $0x48] sm:$0xff]
        %v214 = vld [vmem:[%s170 + $0x50] sm:$0xff]
        %v215 = vld [vmem:[%s170 + $0x58] sm:$0xff]
        %v216 = vld [vmem:[%s170 + $0x60] sm:$0xff]
        %v217 = vld [vmem:[%s170 + $0x68] sm:$0xff]
        %v218 = vld [vmem:[%s170 + $0x70] sm:$0xff]
        %v219 = vld [vmem:[%s170 + $0x78] sm:$0xff]
        %v220 = vpack.c.bf16 %v203, %v203
        %v221 = vpack.c.bf16 %v205, %v204
        %v222 = vpack.c.bf16 %v207, %v206
        %v223 = vpack.c.bf16 %v209, %v208
        %v224 = vpack.c.bf16 %v211, %v210
        %v225 = vpack.c.bf16 %v213, %v212
        %v226 = vpack.c.bf16 %v215, %v214
        %v227 = vpack.c.bf16 %v217, %v216
        %v228 = vpack.c.bf16 %v219, %v218
        %v229 = vld [vmem:[%s197] sm:$0x1]
        %v231 = vlaneseq
        %v232 = vshrl.u32 %v231, 7
        %v233 = vsub.s32 0, %v232
        %v234 = vrot.slane %v229, %v233
        %236 = vmatprep.subr.bf16.mxu0 0
        %237 = vmatpush1.bf16.msra.mxu0 %v221
        %238 = vmatprep.subr.bf16.mxu0 0
        %239 = vmatpush1.bf16.msra.mxu0 %v222
        %240 = vmatprep.subr.bf16.mxu0 0
        %241 = vmatpush1.bf16.msra.mxu0 %v223
        %242 = vmatprep.subr.bf16.mxu0 0
        %243 = vmatpush1.bf16.msra.mxu0 %v224
        %244 = vmatprep.subr.bf16.mxu0 0
        %245 = vmatpush1.bf16.msra.mxu0 %v225
        %246 = vmatprep.subr.bf16.mxu0 0
        %247 = vmatpush1.bf16.msra.mxu0 %v226
        %248 = vmatprep.subr.bf16.mxu0 0
        %249 = vmatpush1.bf16.msra.mxu0 %v227
        %250 = vmatprep.subr.bf16.mxu0 0
        %251 = vmatpush1.bf16.msra.mxu0 %v228
        %252 = vmatprep.subr.bf16.mxu0 0
        %253 = vmatpush1.bf16.msra.mxu0 0
        %254 = vmatprep.subr.bf16.mxu0 0
        %255 = vmatpush1.bf16.msra.mxu0 0
        %256 = vmatprep.subr.bf16.mxu0 0
        %257 = vmatpush1.bf16.msra.mxu0 0
        %258 = vmatprep.subr.bf16.mxu0 0
        %259 = vmatpush1.bf16.msra.mxu0 0
        %260 = vmatprep.subr.bf16.mxu0 0
        %261 = vmatpush1.bf16.msra.mxu0 0
        %262 = vmatprep.subr.bf16.mxu0 0
        %263 = vmatpush1.bf16.msra.mxu0 0
        %264 = vmatprep.subr.bf16.mxu0 0
        %265 = vmatpush1.bf16.msra.mxu0 0
        %266 = vmatprep.subr.bf16.mxu0 0
        %267 = vmatpush1.bf16.msra.mxu0 0
        %268 = vmatprep.mubr.bf16.mxu0 0
        %269 = vmatmul.mubr.bf16.gmra.mrb[0].mxu0 %v220
        %v270 = vpop.f32.mrb[0].mxu0
        %v271 = vadd.f32 %v234, %v270
        %v272 = vpop.f32.mrb[0].mxu0
        %v273 = vpop.f32.mrb[0].mxu0
        %v274 = vpop.f32.mrb[0].mxu0
        %275 = vdwg.mxu0
        %276 = vst [vmem:[%s201] sm:$0xff] %v271
        %p277 = scmp.lt.s32.totalorder %s17, 1
        %s278 = scalar_select %p277, %s17, 1
        %s279 = smul.addr %s278, 8
        %s280 = scalar_lea.vmem %s3, %s279
        // Predicated region
        $region37: #{phi_forward.10} parent=31 // pred_check
          %p281 = pneg %p108
        $region38: #{phi_forward.10} parent=31 // pred_check_branch
          %283 = sbr.rel (%p281) target = $region40
        $region39: #{phi_forward.10} parent=31 // pred_region
          _
        $region40: #{phi_forward.10} parent=31 // pred_fallthru
          _
      $region32: #{phi_forward.10} parent=5 // pred_fallthru
        _
      %p284 = scmp.le.s32.totalorder 2, %s12
      // Predicated region
      $region41: #{phi_forward.10} parent=5 // pred_check
        %p285 = pneg %p284
      $region42: #{phi_forward.10} parent=5 // pred_check_branch
        %287 = sbr.rel (%p285) target = $region44
      $region43: #{phi_forward.10} parent=5 // pred_region
        %s288 = ssub.s32 %s12, 2
        // Predicated region
        $region45: #{phi_forward.10} parent=43 // pred_check
          %p289 = pneg %p114
        $region46: #{phi_forward.10} parent=43 // pred_check_branch
          %291 = sbr.rel (%p289) target = $region48
        $region47: #{phi_forward.10} parent=43 // pred_region
          %p292 = scmp.lt.s32.totalorder %s18, 1
          %s293 = scalar_select %p292, %s18, 1
          %s294 = smul.addr %s293, 8
          %s295 = scalar_lea.vmem %s3, %s294
        $region48: #{phi_forward.10} parent=43 // pred_fallthru
          _
      $region44: #{phi_forward.10} parent=5 // pred_fallthru
        _
    $region6: #{phi_forward.10} parent=1 // loop_footer
      %s16 = sadd.s32 1, %s12
    $region7: #{phi_forward.10} parent=1 // loop_footer_branch
      %11 = sbr.rel target = $region3
    $region8: #{phi_forward.10} parent=1 // loop_exit
      _
    %296 = vsyncpa [#allocation3], 1
    %s297 = scalar_lea.sflag [#allocation3], 1
    %298 = vsyncpa %s297, 1

// kernel: phi_forward.11
$region0: #{phi_forward.11}
  #allocation0 [shape = 'u32[]', space=smem, size = 0x4, offset = 0x4, fixed_abs, tag = 'smem constant byte address 0x4 - core index']
  #allocation1 [shape = 'u32[144,128]{1,0:T(1,128)}', space=vmem, size = 0x12000, scoped, tag = 'internal scratch']
  %s0 = inlined_call_operand.vmem [shape: f32[8,256], index: 0, kind: input, shape index: {}]
  %s1 = inlined_call_operand.hbm [shape: f32[1,256], index: 1, kind: input, shape index: {}]
  %s2 = inlined_call_operand.hbm [shape: f32[1,256], index: 2, kind: input, shape index: {}]
  %s3 = inlined_call_operand.hbm [shape: f32[256,256], index: 3, kind: input, shape index: {}]
  %s4 = inlined_call_operand.hbm [shape: f32[1,256], index: 4, kind: input, shape index: {}]
  %s5 = inlined_call_operand.vmem [shape: f32[8,256], index: 5, kind: output, shape index: {}]
  %s6 = sld [smem:[#allocation0]]
  $region69: #{phi_forward.11} parent=0
    _
  %s8 = ssub.s32 1, %s6
  %s9 = scalar_select 0, %s8, %s6
  $region1: #{phi_forward.11} parent=0
    #allocation2 [shape = 'u8[1024]{0}', space=vmem, size = 0x400, scoped, tag = 'input window, operand 1, single buffered']
    #allocation3 [shape = 's32[2]{0}', space=sflag, size = 0x8, scoped, tag = 'scoped memory for phi_forward.11']
    #allocation4 [shape = 'u8[1024]{0}', space=vmem, size = 0x400, scoped, tag = 'input window, operand 2, single buffered']
    #allocation5 [shape = 's32[1]{0}', space=sflag, size = 0x4, scoped, tag = 'scoped memory for phi_forward.11']
    #allocation6 [shape = 'u8[262144]{0}', space=vmem, size = 0x40000, scoped, tag = 'input window, operand 3']
    #allocation7 [shape = 'u8[1024]{0}', space=vmem, size = 0x400, scoped, tag = 'input window, operand 4']
    %10 = vsyncpa [#allocation3], 0
    %11 = vsyncpa [#allocation5], 0
    loop: start=0, step=1, limit=4
    $region2: #{phi_forward.11} parent=1 // loop_pre_header
      _
    $region3: #{phi_forward.11} parent=1 // loop_header
      %s13 = sphi 0, %s17
      %p14 = scmp.ge.s32.totalorder %s13, 4
      %s21 = sphi 0, %s21
      %s23 = sphi 0, %s21
      %s24 = sphi 0, %s23
      %s38 = sphi 0, %s24
      %s42 = sphi 0, %s42
      %s44 = sphi 0, %s42
      %s45 = sphi 0, %s44
      %s59 = sphi 0, %s45
      %s63 = sphi 0, %s63
      %s65 = sphi 0, %s63
      %s66 = sphi 0, %s65
      %s80 = sphi 0, %s66
      %s86 = sphi 0, %s88
      %s89 = sphi 0, %s86
      %s90 = sphi 0, %s89
      %s106 = sphi 0, %s90
      %s112 = sphi 0, %s114
      %s115 = sphi 0, %s112
      %s116 = sphi 0, %s115
      %s132 = sphi 0, %s116
      %s138 = sphi 0, %s140
      %s141 = sphi 0, %s138
      %s142 = sphi 0, %s141
      %s158 = sphi 0, %s142
    $region4: #{phi_forward.11} parent=1 // loop_header_branch
      %16 = sbr.rel (%p14) target = $region8
    $region5: #{phi_forward.11} parent=1 // loop_body
      %s18 = ssub.s32 %s13, 1
      %s19 = ssub.s32 %s13, 2
      %s20 = sadd.s32 %s13, 1
      %s22 = sadd.s32 %s21, 1
      %p25 = scmp.eq.s32.totalorder %s13, 1
      %p26 = scmp.ne.s32.totalorder %s21, %s23
      %p27 = scmp.eq.s32.totalorder %s13, 0
      %p28 = por %p26, %p27
      %p29 = scmp.ne.s32.totalorder %s21, %s23
      %p30 = scmp.eq.s32.totalorder %s18, 1
      %p31 = por %p29, %p30
      %p32 = scmp.ne.s32.totalorder %s23, %s24
      %p33 = scmp.eq.s32.totalorder %s18, 0
      %p34 = por %p32, %p33
      %p35 = scmp.ne.s32.totalorder %s23, %s24
      %p36 = scmp.eq.s32.totalorder %s19, 1
      %p37 = por %p35, %p36
      %p39 = scmp.ne.s32.totalorder %s24, %s38
      %p40 = scmp.eq.s32.totalorder %s19, 0
      %p41 = por %p39, %p40
      %s43 = sadd.s32 %s42, 1
      %p46 = scmp.eq.s32.totalorder %s13, 1
      %p47 = scmp.ne.s32.totalorder %s42, %s44
      %p48 = scmp.eq.s32.totalorder %s13, 0
      %p49 = por %p47, %p48
      %p50 = scmp.ne.s32.totalorder %s42, %s44
      %p51 = scmp.eq.s32.totalorder %s18, 1
      %p52 = por %p50, %p51
      %p53 = scmp.ne.s32.totalorder %s44, %s45
      %p54 = scmp.eq.s32.totalorder %s18, 0
      %p55 = por %p53, %p54
      %p56 = scmp.ne.s32.totalorder %s44, %s45
      %p57 = scmp.eq.s32.totalorder %s19, 1
      %p58 = por %p56, %p57
      %p60 = scmp.ne.s32.totalorder %s45, %s59
      %p61 = scmp.eq.s32.totalorder %s19, 0
      %p62 = por %p60, %p61
      %s64 = sadd.s32 %s63, 1
      %p67 = scmp.eq.s32.totalorder %s13, 1
      %p68 = scmp.ne.s32.totalorder %s63, %s65
      %p69 = scmp.eq.s32.totalorder %s13, 0
      %p70 = por %p68, %p69
      %p71 = scmp.ne.s32.totalorder %s63, %s65
      %p72 = scmp.eq.s32.totalorder %s18, 1
      %p73 = por %p71, %p72
      %p74 = scmp.ne.s32.totalorder %s65, %s66
      %p75 = scmp.eq.s32.totalorder %s18, 0
      %p76 = por %p74, %p75
      %p77 = scmp.ne.s32.totalorder %s65, %s66
      %p78 = scmp.eq.s32.totalorder %s19, 1
      %p79 = por %p77, %p78
      %p81 = scmp.ne.s32.totalorder %s66, %s80
      %p82 = scmp.eq.s32.totalorder %s19, 0
      %p83 = por %p81, %p82
      %s84 = ssub.s32 %s13, %s20
      %p85 = scmp.eq.s32.totalorder %s84, 0
      %s87 = sadd.s32 %s86, 1
      %s88 = scalar_select %p85, %s86, %s87
      %p91 = pneg %p85
      %p92 = scmp.eq.s32.totalorder %s13, 1
      %p93 = por %p91, %p92
      %p94 = scmp.ne.s32.totalorder %s86, %s89
      %p95 = scmp.eq.s32.totalorder %s13, 0
      %p96 = por %p94, %p95
      %p97 = scmp.ne.s32.totalorder %s86, %s89
      %p98 = scmp.eq.s32.totalorder %s18, 1
      %p99 = por %p97, %p98
      %p100 = scmp.ne.s32.totalorder %s89, %s90
      %p101 = scmp.eq.s32.totalorder %s18, 0
      %p102 = por %p100, %p101
      %p103 = scmp.ne.s32.totalorder %s89, %s90
      %p104 = scmp.eq.s32.totalorder %s19, 1
      %p105 = por %p103, %p104
      %p107 = scmp.ne.s32.totalorder %s90, %s106
      %p108 = scmp.eq.s32.totalorder %s19, 0
      %p109 = por %p107, %p108
      %s110 = ssub.s32 %s13, %s20
      %p111 = scmp.eq.s32.totalorder %s110, 0
      %s113 = sadd.s32 %s112, 1
      %s114 = scalar_select %p111, %s112, %s113
      %p117 = pneg %p111
      %p118 = scmp.eq.s32.totalorder %s13, 1
      %p119 = por %p117, %p118
      %p120 = scmp.ne.s32.totalorder %s112, %s115
      %p121 = scmp.eq.s32.totalorder %s13, 0
      %p122 = por %p120, %p121
      %p123 = scmp.ne.s32.totalorder %s112, %s115
      %p124 = scmp.eq.s32.totalorder %s18, 1
      %p125 = por %p123, %p124
      %p126 = scmp.ne.s32.totalorder %s115, %s116
      %p127 = scmp.eq.s32.totalorder %s18, 0
      %p128 = por %p126, %p127
      %p129 = scmp.ne.s32.totalorder %s115, %s116
      %p130 = scmp.eq.s32.totalorder %s19, 1
      %p131 = por %p129, %p130
      %p133 = scmp.ne.s32.totalorder %s116, %s132
      %p134 = scmp.eq.s32.totalorder %s19, 0
      %p135 = por %p133, %p134
      %s136 = ssub.s32 %s13, %s20
      %p137 = scmp.eq.s32.totalorder %s136, 0
      %s139 = sadd.s32 %s138, 1
      %s140 = scalar_select %p137, %s138, %s139
      %p143 = pneg %p137
      %p144 = scmp.eq.s32.totalorder %s13, 1
      %p145 = por %p143, %p144
      %p146 = scmp.ne.s32.totalorder %s138, %s141
      %p147 = scmp.eq.s32.totalorder %s13, 0
      %p148 = por %p146, %p147
      %p149 = scmp.ne.s32.totalorder %s138, %s141
      %p150 = scmp.eq.s32.totalorder %s18, 1
      %p151 = por %p149, %p150
      %p152 = scmp.ne.s32.totalorder %s141, %s142
      %p153 = scmp.eq.s32.totalorder %s18, 0
      %p154 = por %p152, %p153
      %p155 = scmp.ne.s32.totalorder %s141, %s142
      %p156 = scmp.eq.s32.totalorder %s19, 1
      %p157 = por %p155, %p156
      %p159 = scmp.ne.s32.totalorder %s142, %s158
      %p160 = scmp.eq.s32.totalorder %s19, 0
      %p161 = por %p159, %p160
      %p162 = scmp.le.s32.totalorder 1, %s13
      %p163 = scmp.lt.s32.totalorder %s13, 3
      %p164 = pnand %p162, %p163
      %p165 = pneg %p164
      // Predicated region
      $region9: #{phi_forward.11} parent=5 // pred_check
        _
      $region10: #{phi_forward.11} parent=5 // pred_check_branch
        %167 = sbr.rel (%p164) target = $region12
      $region11: #{phi_forward.11} parent=5 // pred_region
        %s168 = ssub.s32 %s13, 1
        // Predicated region
        $region13: #{phi_forward.11} parent=11 // pred_check
          %p169 = pneg %p34
        $region14: #{phi_forward.11} parent=11 // pred_check_branch
          %171 = sbr.rel (%p169) target = $region16
        $region15: #{phi_forward.11} parent=11 // pred_region
          _
        $region16: #{phi_forward.11} parent=11 // pred_fallthru
          _
        // Predicated region
        $region17: #{phi_forward.11} parent=11 // pred_check
          %p172 = pneg %p55
        $region18: #{phi_forward.11} parent=11 // pred_check_branch
          %174 = sbr.rel (%p172) target = $region20
        $region19: #{phi_forward.11} parent=11 // pred_region
          %s176 = ssub.s32 32, 32
          %177 = vsyncadd [#allocation3], %s176
          %s179 = sshll.u32 [#allocation2], 4
          %s180 = int_to_ptr.vmem [resolvable:$true] %s179
          %182 = dma.hbm_to_vmem [thread:$0]  %s1, 32, %s180, [#allocation3]
        $region20: #{phi_forward.11} parent=11 // pred_fallthru
          _
        // Predicated region
        $region21: #{phi_forward.11} parent=11 // pred_check
          %p183 = pneg %p76
        $region22: #{phi_forward.11} parent=11 // pred_check_branch
          %185 = sbr.rel (%p183) target = $region24
        $region23: #{phi_forward.11} parent=11 // pred_region
          %s187 = ssub.s32 32, 32
          %188 = vsyncadd [#allocation5], %s187
          %s190 = sshll.u32 [#allocation4], 4
          %s191 = int_to_ptr.vmem [resolvable:$true] %s190
          %193 = dma.hbm_to_vmem [thread:$0]  %s2, 32, %s191, [#allocation5]
        $region24: #{phi_forward.11} parent=11 // pred_fallthru
          _
      $region12: #{phi_forward.11} parent=5 // pred_fallthru
        _
      %p194 = scmp.lt.s32.totalorder %s13, 2
      // Predicated region
      $region25: #{phi_forward.11} parent=5 // pred_check
        %p195 = pneg %p194
      $region26: #{phi_forward.11} parent=5 // pred_check_branch
        %197 = sbr.rel (%p195) target = $region28
      $region27: #{phi_forward.11} parent=5 // pred_region
        // Predicated region
        $region29: #{phi_forward.11} parent=27 // pred_check
          %p198 = pneg %p96
        $region30: #{phi_forward.11} parent=27 // pred_check_branch
          %200 = sbr.rel (%p198) target = $region32
        $region31: #{phi_forward.11} parent=27 // pred_region
          %s201 = sand.u32 %s13, 1
          %s202 = scalar_lea.sflag [#allocation3], %s201
          %s203 = sand.u32 %s86, 1
          %s204 = smul.addr %s203, 256
          %s205 = scalar_lea.vmem [#allocation6], %s204
          %s207 = ssub.s32 4096, 4096
          %208 = vsyncadd %s202, %s207
          %s209 = smul.addr %s13, 128
          %s210 = scalar_lea.hbm %s3, %s209
          %s211 = sshll.u32 %s205, 4
          %s212 = int_to_ptr.vmem [resolvable:$true] %s211
          %217 = dma.hbm_to_vmem [thread:$0]  %s210, 4096, %s212, %s202, 256, 128, 8
        $region32: #{phi_forward.11} parent=27 // pred_fallthru
          _
        // Predicated region
        $region33: #{phi_forward.11} parent=27 // pred_check
          %p218 = pneg %p122
        $region34: #{phi_forward.11} parent=27 // pred_check_branch
          %220 = sbr.rel (%p218) target = $region36
        $region35: #{phi_forward.11} parent=27 // pred_region
          %s221 = sand.u32 %s13, 1
          %s222 = scalar_lea.sflag [#allocation3], %s221
          %s223 = sand.u32 %s112, 1
          %s224 = scalar_lea.vmem [#allocation7], %s223
          %s226 = ssub.s32 16, 16
          %227 = vsyncadd %s222, %s226
          %s228 = smul.addr %s13, 16
          %s229 = scalar_lea.hbm %s4, %s228
          %s231 = sshll.u32 %s224, 4
          %s232 = int_to_ptr.vmem [resolvable:$true] %s231
          %234 = dma.hbm_to_vmem [thread:$0]  %s229, 16, %s232, %s222
        $region36: #{phi_forward.11} parent=27 // pred_fallthru
          _
      $region28: #{phi_forward.11} parent=5 // pred_fallthru
        _
      %p235 = scmp.le.s32.totalorder 1, %s13
      %p236 = scmp.lt.s32.totalorder %s13, 3
      %p237 = pnand %p235, %p236
      %p238 = pneg %p237
      // Predicated region
      $region37: #{phi_forward.11} parent=5 // pred_check
        _
      $region38: #{phi_forward.11} parent=5 // pred_check_branch
        %240 = sbr.rel (%p237) target = $region40
      $region39: #{phi_forward.11} parent=5 // pred_region
        %s241 = ssub.s32 %s13, 1
        // Predicated region
        $region41: #{phi_forward.11} parent=39 // pred_check
          %p242 = pneg %p55
        $region42: #{phi_forward.11} parent=39 // pred_check_branch
          %244 = sbr.rel (%p242) target = $region44
        $region43: #{phi_forward.11} parent=39 // pred_region
          %245 = dma.done [#allocation3], 32
        $region44: #{phi_forward.11} parent=39 // pred_fallthru
          _
        // Predicated region
        $region45: #{phi_forward.11} parent=39 // pred_check
          %p246 = pneg %p76
        $region46: #{phi_forward.11} parent=39 // pred_check_branch
          %248 = sbr.rel (%p246) target = $region48
        $region47: #{phi_forward.11} parent=39 // pred_region
          %249 = dma.done [#allocation5], 32
        $region48: #{phi_forward.11} parent=39 // pred_fallthru
          _
        %s250 = sand.u32 %s18, 1
        %s251 = scalar_lea.sflag [#allocation3], %s250
        %s252 = sand.u32 %s89, 1
        %s253 = smul.addr %s252, 256
        %s254 = scalar_lea.vmem [#allocation6], %s253
        // Predicated region
        $region49: #{phi_forward.11} parent=39 // pred_check
          %p255 = pneg %p102
        $region50: #{phi_forward.11} parent=39 // pred_check_branch
          %257 = sbr.rel (%p255) target = $region52
        $region51: #{phi_forward.11} parent=39 // pred_region
          %258 = dma.done %s251, 4096
        $region52: #{phi_forward.11} parent=39 // pred_fallthru
          _
        %s259 = sand.u32 %s18, 1
        %s260 = scalar_lea.sflag [#allocation3], %s259
        %s261 = sand.u32 %s115, 1
        %s262 = scalar_lea.vmem [#allocation7], %s261
        // Predicated region
        $region53: #{phi_forward.11} parent=39 // pred_check
          %p263 = pneg %p128
        $region54: #{phi_forward.11} parent=39 // pred_check_branch
          %265 = sbr.rel (%p263) target = $region56
        $region55: #{phi_forward.11} parent=39 // pred_region
          %266 = dma.done %s260, 16
        $region56: #{phi_forward.11} parent=39 // pred_fallthru
          _
        %p267 = pneg %p34
        %p268 = pneg %p31
        %p269 = pneg %p55
        %p270 = pneg %p52
        %p271 = pneg %p76
        %p272 = pneg %p73
        %s273 = sand.u32 %s18, 1
        %s274 = scalar_lea.sflag [#allocation3], %s273
        %s275 = sand.u32 %s89, 1
        %s276 = smul.addr %s275, 256
        %s277 = scalar_lea.vmem [#allocation6], %s276
        %p278 = pneg %p102
        %p279 = pneg %p99
        %s280 = sand.u32 %s18, 1
        %s281 = scalar_lea.sflag [#allocation3], %s280
        %s282 = sand.u32 %s115, 1
        %s283 = scalar_lea.vmem [#allocation7], %s282
        %p284 = pneg %p128
        %p285 = pneg %p125
        %p286 = pneg %p154
        %p287 = pneg %p151
        %p288 = scmp.lt.s32.totalorder %s18, 1
        %s289 = scalar_select %p288, %s18, 1
        %s290 = smul.addr %s289, 8
        %s291 = scalar_lea.vmem %s5, %s290
        %p292 = scmp.lt.s32.totalorder %s18, 1
        %s293 = scalar_select %p292, %s18, 1
        %s294 = smul.addr %s293, 8
        %s295 = scalar_lea.vmem %s5, %s294
        %v297 = vld [vmem:[%s0] sm:$0xff]
        %v298 = vld [vmem:[%s0 + $0x8] sm:$0xff]
        %v299 = vrot.slane %v297, 4
        %v300 = vadd.f32 %v297, %v299
        %v301 = vrot.slane %v300, 2
        %v302 = vadd.f32 %v300, %v301
        %v303 = vrot.slane %v302, 1
        %v304 = vadd.f32 %v302, %v303
        %v305 = vrot.slane %v298, 4
        %v306 = vadd.f32 %v298, %v305
        %v307 = vrot.slane %v306, 2
        %v308 = vadd.f32 %v306, %v307
        %v309 = vrot.slane %v308, 1
        %v310 = vadd.f32 %v308, %v309
        %v311 = vrcp.pop 8.0
        %v312 = vmul.f32 %v304, %v311
        %v313 = vmul.f32 %v310, %v311
        %v314 = vsub.f32 %v297, %v312
        %v315 = vsub.f32 %v298, %v313
        %v316 = vmul.f32 %v314, %v314
        %v317 = vmul.f32 %v315, %v315
        %v318 = vrot.slane %v316, 4
        %v319 = vadd.f32 %v316, %v318
        %v320 = vrot.slane %v319, 2
        %v321 = vadd.f32 %v319, %v320
        %v322 = vrot.slane %v321, 1
        %v323 = vadd.f32 %v321, %v322
        %v324 = vrot.slane %v317, 4
        %v325 = vadd.f32 %v317, %v324
        %v326 = vrot.slane %v325, 2
        %v327 = vadd.f32 %v325, %v326
        %v328 = vrot.slane %v327, 1
        %v329 = vadd.f32 %v327, %v328
        %v330 = vmul.f32 %v323, %v311
        %v331 = vmul.f32 %v329, %v311
        %v332 = vadd.f32 %v330, 1e-05
        %v333 = vadd.f32 %v331, 1e-05
        %v334 = vrsqrt.pop %v332
        %v335 = vrsqrt.pop %v333
        %v336 = vmul.f32 %v314, %v334
        %v337 = vmul.f32 %v315, %v335
        %v338 = vld [vmem:[#allocation2] sm:$0x3]
        %v340 = vlaneseq
        %v341 = vshrl.u32 %v340, 7
        %v342 = vsub.s32 0, %v341
        %v343 = vrot.slane %v338, %v342
        %v344 = vlaneseq
        %v345 = vshrl.u32 %v344, 7
        %v346 = vsub.s32 1, %v345
        %v347 = vrot.slane %v338, %v346
        %v350 = vmul.f32 %v336, %v343
        %v351 = vmul.f32 %v337, %v347
        %v352 = vld [vmem:[#allocation4] sm:$0x3]
        %v354 = vlaneseq
        %v355 = vshrl.u32 %v354, 7
        %v356 = vsub.s32 0, %v355
        %v357 = vrot.slane %v352, %v356
        %v358 = vlaneseq
        %v359 = vshrl.u32 %v358, 7
        %v360 = vsub.s32 1, %v359
        %v361 = vrot.slane %v352, %v360
        %v364 = vadd.f32 %v350, %v357
        %v365 = vadd.f32 %v351, %v361
        %vm366 = vcmp.ge.f32.partialorder %v364, 0.0
        %vm367 = vcmp.ge.f32.partialorder %v365, 0.0
        %v368 = vmul.f32 %v364, 0.2
        %v369 = vmul.f32 %v365, 0.2
        %v370 = vsel %vm366, %v364, %v368
        %v371 = vsel %vm367, %v365, %v369
        %v372 = vld [vmem:[%s254] sm:$0xff]
        %v373 = vld [vmem:[%s254 + $0x8] sm:$0xff]
        %v374 = vld [vmem:[%s254 + $0x10] sm:$0xff]
        %v375 = vld [vmem:[%s254 + $0x18] sm:$0xff]
        %v376 = vld [vmem:[%s254 + $0x20] sm:$0xff]
        %v377 = vld [vmem:[%s254 + $0x28] sm:$0xff]
        %v378 = vld [vmem:[%s254 + $0x30] sm:$0xff]
        %v379 = vld [vmem:[%s254 + $0x38] sm:$0xff]
        %v380 = vld [vmem:[%s254 + $0x40] sm:$0xff]
        %v381 = vld [vmem:[%s254 + $0x48] sm:$0xff]
        %v382 = vld [vmem:[%s254 + $0x50] sm:$0xff]
        %v383 = vld [vmem:[%s254 + $0x58] sm:$0xff]
        %v384 = vld [vmem:[%s254 + $0x60] sm:$0xff]
        %v385 = vld [vmem:[%s254 + $0x68] sm:$0xff]
        %v386 = vld [vmem:[%s254 + $0x70] sm:$0xff]
        %v387 = vld [vmem:[%s254 + $0x78] sm:$0xff]
        %v388 = vld [vmem:[%s254 + $0x80] sm:$0xff]
        %v389 = vld [vmem:[%s254 + $0x88] sm:$0xff]
        %v390 = vld [vmem:[%s254 + $0x90] sm:$0xff]
        %v391 = vld [vmem:[%s254 + $0x98] sm:$0xff]
        %v392 = vld [vmem:[%s254 + $0xa0] sm:$0xff]
        %v393 = vld [vmem:[%s254 + $0xa8] sm:$0xff]
        %v394 = vld [vmem:[%s254 + $0xb0] sm:$0xff]
        %v395 = vld [vmem:[%s254 + $0xb8] sm:$0xff]
        %v396 = vld [vmem:[%s254 + $0xc0] sm:$0xff]
        %v397 = vld [vmem:[%s254 + $0xc8] sm:$0xff]
        %v398 = vld [vmem:[%s254 + $0xd0] sm:$0xff]
        %v399 = vld [vmem:[%s254 + $0xd8] sm:$0xff]
        %v400 = vld [vmem:[%s254 + $0xe0] sm:$0xff]
        %v401 = vld [vmem:[%s254 + $0xe8] sm:$0xff]
        %v402 = vld [vmem:[%s254 + $0xf0] sm:$0xff]
        %v403 = vld [vmem:[%s254 + $0xf8] sm:$0xff]
        %v404 = vpack.c.bf16 %v370, %v370
        %v405 = vpack.c.bf16 %v371, %v371
        %v406 = vpack.c.bf16 %v373, %v372
        %v407 = vpack.c.bf16 %v375, %v374
        %v408 = vpack.c.bf16 %v377, %v376
        %v409 = vpack.c.bf16 %v379, %v378
        %v410 = vpack.c.bf16 %v381, %v380
        %v411 = vpack.c.bf16 %v383, %v382
        %v412 = vpack.c.bf16 %v385, %v384
        %v413 = vpack.c.bf16 %v387, %v386
        %v414 = vpack.c.bf16 %v389, %v388
        %v415 = vpack.c.bf16 %v391, %v390
        %v416 = vpack.c.bf16 %v393, %v392
        %v417 = vpack.c.bf16 %v395, %v394
        %v418 = vpack.c.bf16 %v397, %v396
        %v419 = vpack.c.bf16 %v399, %v398
        %v420 = vpack.c.bf16 %v401, %v400
        %v421 = vpack.c.bf16 %v403, %v402
        %v422 = vld [vmem:[%s262] sm:$0x1]
        %v424 = vlaneseq
        %v425 = vshrl.u32 %v424, 7
        %v426 = vsub.s32 0, %v425
        %v427 = vrot.slane %v422, %v426
        %429 = vmatprep.subr.bf16.mxu0 0
        %430 = vmatpush1.bf16.msra.mxu0 %v406
        %431 = vmatprep.subr.bf16.mxu0 0
        %432 = vmatpush1.bf16.msra.mxu0 %v407
        %433 = vmatprep.subr.bf16.mxu0 0
        %434 = vmatpush1.bf16.msra.mxu0 %v408
        %435 = vmatprep.subr.bf16.mxu0 0
        %436 = vmatpush1.bf16.msra.mxu0 %v409
        %437 = vmatprep.subr.bf16.mxu0 0
        %438 = vmatpush1.bf16.msra.mxu0 %v410
        %439 = vmatprep.subr.bf16.mxu0 0
        %440 = vmatpush1.bf16.msra.mxu0 %v411
        %441 = vmatprep.subr.bf16.mxu0 0
        %442 = vmatpush1.bf16.msra.mxu0 %v412
        %443 = vmatprep.subr.bf16.mxu0 0
        %444 = vmatpush1.bf16.msra.mxu0 %v413
        %445 = vmatprep.subr.bf16.mxu0 0
        %446 = vmatpush1.bf16.msra.mxu0 %v414
        %447 = vmatprep.subr.bf16.mxu0 0
        %448 = vmatpush1.bf16.msra.mxu0 %v415
        %449 = vmatprep.subr.bf16.mxu0 0
        %450 = vmatpush1.bf16.msra.mxu0 %v416
        %451 = vmatprep.subr.bf16.mxu0 0
        %452 = vmatpush1.bf16.msra.mxu0 %v417
        %453 = vmatprep.subr.bf16.mxu0 0
        %454 = vmatpush1.bf16.msra.mxu0 %v418
        %455 = vmatprep.subr.bf16.mxu0 0
        %456 = vmatpush1.bf16.msra.mxu0 %v419
        %457 = vmatprep.subr.bf16.mxu0 0
        %458 = vmatpush1.bf16.msra.mxu0 %v420
        %459 = vmatprep.subr.bf16.mxu0 0
        %460 = vmatpush1.bf16.msra.mxu0 %v421
        %461 = vmatprep.mubr.bf16.mxu0 %v405
        %462 = vmatmul.mubr.bf16.gmra.mrb[0].mxu0 %v404
        %v463 = vpop.f32.mrb[0].mxu0
        %v464 = vadd.f32 %v427, %v463
        %v465 = vpop.f32.mrb[0].mxu0
        %v466 = vpop.f32.mrb[0].mxu0
        %v467 = vpop.f32.mrb[0].mxu0
        %468 = vdwg.mxu0
        %469 = vst [vmem:[%s295] sm:$0xff] %v464
        %p470 = scmp.lt.s32.totalorder %s18, 1
        %s471 = scalar_select %p470, %s18, 1
        %s472 = smul.addr %s471, 8
        %s473 = scalar_lea.vmem %s5, %s472
        // Predicated region
        $region57: #{phi_forward.11} parent=39 // pred_check
          %p474 = pneg %p151
        $region58: #{phi_forward.11} parent=39 // pred_check_branch
          %476 = sbr.rel (%p474) target = $region60
        $region59: #{phi_forward.11} parent=39 // pred_region
          _
        $region60: #{phi_forward.11} parent=39 // pred_fallthru
          _
      $region40: #{phi_forward.11} parent=5 // pred_fallthru
        _
      %p477 = scmp.le.s32.totalorder 2, %s13
      // Predicated region
      $region61: #{phi_forward.11} parent=5 // pred_check
        %p478 = pneg %p477
      $region62: #{phi_forward.11} parent=5 // pred_check_branch
        %480 = sbr.rel (%p478) target = $region64
      $region63: #{phi_forward.11} parent=5 // pred_region
        %s481 = ssub.s32 %s13, 2
        // Predicated region
        $region65: #{phi_forward.11} parent=63 // pred_check
          %p482 = pneg %p157
        $region66: #{phi_forward.11} parent=63 // pred_check_branch
          %484 = sbr.rel (%p482) target = $region68
        $region67: #{phi_forward.11} parent=63 // pred_region
          %p485 = scmp.lt.s32.totalorder %s19, 1
          %s486 = scalar_select %p485, %s19, 1
          %s487 = smul.addr %s486, 8
          %s488 = scalar_lea.vmem %s5, %s487
        $region68: #{phi_forward.11} parent=63 // pred_fallthru
          _
      $region64: #{phi_forward.11} parent=5 // pred_fallthru
        _
    $region6: #{phi_forward.11} parent=1 // loop_footer
      %s17 = sadd.s32 1, %s13
    $region7: #{phi_forward.11} parent=1 // loop_footer_branch
      %12 = sbr.rel target = $region3
    $region8: #{phi_forward.11} parent=1 // loop_exit
      _
    %489 = vsyncpa [#allocation3], 1
    %s490 = scalar_lea.sflag [#allocation3], 1
    %491 = vsyncpa %s490, 1
    %492 = vsyncpa [#allocation5], 1

// kernel: phi_forward.12
$region0: #{phi_forward.12}
  #allocation0 [shape = 'u32[]', space=smem, size = 0x4, offset = 0x4, fixed_abs, tag = 'smem constant byte address 0x4 - core index']
  #allocation1 [shape = 'u32[144,128]{1,0:T(1,128)}', space=vmem, size = 0x12000, scoped, tag = 'internal scratch']
  %s0 = inlined_call_operand.vmem [shape: f32[8,256], index: 0, kind: input, shape index: {}]
  %s1 = inlined_call_operand.vmem [shape: f32[1,256], index: 1, kind: input, shape index: {}]
  %s2 = inlined_call_operand.vmem [shape: f32[1,256], index: 2, kind: input, shape index: {}]
  %s3 = inlined_call_operand.vmem [shape: f32[256,256], index: 3, kind: input, shape index: {}]
  %s4 = inlined_call_operand.vmem [shape: f32[1,256], index: 4, kind: input, shape index: {}]
  %s5 = inlined_call_operand.vmem [shape: f32[8,256], index: 5, kind: input, shape index: {}]
  %s6 = inlined_call_operand.vmem [shape: f32[8,256], index: 6, kind: output, shape index: {}]
  %s7 = sld [smem:[#allocation0]]
  $region95: #{phi_forward.12} parent=0
    _
  %s9 = ssub.s32 1, %s7
  %s10 = scalar_select 0, %s9, %s7
  $region1: #{phi_forward.12} parent=0
    #allocation2 [shape = 'u8[262144]{0}', space=vmem, size = 0x40000, scoped, tag = 'input window, operand 3']
    loop: start=0, step=1, limit=4
    $region2: #{phi_forward.12} parent=1 // loop_pre_header
      _
    $region3: #{phi_forward.12} parent=1 // loop_header
      %s12 = sphi 0, %s16
      %p13 = scmp.ge.s32.totalorder %s12, 4
      %s20 = sphi 0, %s20
      %s22 = sphi 0, %s20
      %s23 = sphi 0, %s22
      %s37 = sphi 0, %s23
      %s41 = sphi 0, %s41
      %s43 = sphi 0, %s41
      %s44 = sphi 0, %s43
      %s58 = sphi 0, %s44
      %s62 = sphi 0, %s62
      %s64 = sphi 0, %s62
      %s65 = sphi 0, %s64
      %s79 = sphi 0, %s65
      %s85 = sphi 0, %s87
      %s88 = sphi 0, %s85
      %s89 = sphi 0, %s88
      %s105 = sphi 0, %s89
      %s111 = sphi 0, %s113
      %s114 = sphi 0, %s111
      %s115 = sphi 0, %s114
      %s131 = sphi 0, %s115
      %s137 = sphi 0, %s139
      %s140 = sphi 0, %s137
      %s141 = sphi 0, %s140
      %s157 = sphi 0, %s141
      %s163 = sphi 0, %s165
      %s166 = sphi 0, %s163
      %s167 = sphi 0, %s166
      %s183 = sphi 0, %s167
    $region4: #{phi_forward.12} parent=1 // loop_header_branch
      %15 = sbr.rel (%p13) target = $region8
    $region5: #{phi_forward.12} parent=1 // loop_body
      %s17 = ssub.s32 %s12, 1
      %s18 = ssub.s32 %s12, 2
      %s19 = sadd.s32 %s12, 1
      %s21 = sadd.s32 %s20, 1
      %p24 = scmp.eq.s32.totalorder %s12, 1
      %p25 = scmp.ne.s32.totalorder %s20, %s22
      %p26 = scmp.eq.s32.totalorder %s12, 0
      %p27 = por %p25, %p26
      %p28 = scmp.ne.s32.totalorder %s20, %s22
      %p29 = scmp.eq.s32.totalorder %s17, 1
      %p30 = por %p28, %p29
      %p31 = scmp.ne.s32.totalorder %s22, %s23
      %p32 = scmp.eq.s32.totalorder %s17, 0
      %p33 = por %p31, %p32
      %p34 = scmp.ne.s32.totalorder %s22, %s23
      %p35 = scmp.eq.s32.totalorder %s18, 1
      %p36 = por %p34, %p35
      %p38 = scmp.ne.s32.totalorder %s23, %s37
      %p39 = scmp.eq.s32.totalorder %s18, 0
      %p40 = por %p38, %p39
      %s42 = sadd.s32 %s41, 1
      %p45 = scmp.eq.s32.totalorder %s12, 1
      %p46 = scmp.ne.s32.totalorder %s41, %s43
      %p47 = scmp.eq.s32.totalorder %s12, 0
      %p48 = por %p46, %p47
      %p49 = scmp.ne.s32.totalorder %s41, %s43
      %p50 = scmp.eq.s32.totalorder %s17, 1
      %p51 = por %p49, %p50
      %p52 = scmp.ne.s32.totalorder %s43, %s44
      %p53 = scmp.eq.s32.totalorder %s17, 0
      %p54 = por %p52, %p53
      %p55 = scmp.ne.s32.totalorder %s43, %s44
      %p56 = scmp.eq.s32.totalorder %s18, 1
      %p57 = por %p55, %p56
      %p59 = scmp.ne.s32.totalorder %s44, %s58
      %p60 = scmp.eq.s32.totalorder %s18, 0
      %p61 = por %p59, %p60
      %s63 = sadd.s32 %s62, 1
      %p66 = scmp.eq.s32.totalorder %s12, 1
      %p67 = scmp.ne.s32.totalorder %s62, %s64
      %p68 = scmp.eq.s32.totalorder %s12, 0
      %p69 = por %p67, %p68
      %p70 = scmp.ne.s32.totalorder %s62, %s64
      %p71 = scmp.eq.s32.totalorder %s17, 1
      %p72 = por %p70, %p71
      %p73 = scmp.ne.s32.totalorder %s64, %s65
      %p74 = scmp.eq.s32.totalorder %s17, 0
      %p75 = por %p73, %p74
      %p76 = scmp.ne.s32.totalorder %s64, %s65
      %p77 = scmp.eq.s32.totalorder %s18, 1
      %p78 = por %p76, %p77
      %p80 = scmp.ne.s32.totalorder %s65, %s79
      %p81 = scmp.eq.s32.totalorder %s18, 0
      %p82 = por %p80, %p81
      %s83 = ssub.s32 %s12, %s19
      %p84 = scmp.eq.s32.totalorder %s83, 0
      %s86 = sadd.s32 %s85, 1
      %s87 = scalar_select %p84, %s85, %s86
      %p90 = pneg %p84
      %p91 = scmp.eq.s32.totalorder %s12, 1
      %p92 = por %p90, %p91
      %p93 = scmp.ne.s32.totalorder %s85, %s88
      %p94 = scmp.eq.s32.totalorder %s12, 0
      %p95 = por %p93, %p94
      %p96 = scmp.ne.s32.totalorder %s85, %s88
      %p97 = scmp.eq.s32.totalorder %s17, 1
      %p98 = por %p96, %p97
      %p99 = scmp.ne.s32.totalorder %s88, %s89
      %p100 = scmp.eq.s32.totalorder %s17, 0
      %p101 = por %p99, %p100
      %p102 = scmp.ne.s32.totalorder %s88, %s89
      %p103 = scmp.eq.s32.totalorder %s18, 1
      %p104 = por %p102, %p103
      %p106 = scmp.ne.s32.totalorder %s89, %s105
      %p107 = scmp.eq.s32.totalorder %s18, 0
      %p108 = por %p106, %p107
      %s109 = ssub.s32 %s12, %s19
      %p110 = scmp.eq.s32.totalorder %s109, 0
      %s112 = sadd.s32 %s111, 1
      %s113 = scalar_select %p110, %s111, %s112
      %p116 = pneg %p110
      %p117 = scmp.eq.s32.totalorder %s12, 1
      %p118 = por %p116, %p117
      %p119 = scmp.ne.s32.totalorder %s111, %s114
      %p120 = scmp.eq.s32.totalorder %s12, 0
      %p121 = por %p119, %p120
      %p122 = scmp.ne.s32.totalorder %s111, %s114
      %p123 = scmp.eq.s32.totalorder %s17, 1
      %p124 = por %p122, %p123
      %p125 = scmp.ne.s32.totalorder %s114, %s115
      %p126 = scmp.eq.s32.totalorder %s17, 0
      %p127 = por %p125, %p126
      %p128 = scmp.ne.s32.totalorder %s114, %s115
      %p129 = scmp.eq.s32.totalorder %s18, 1
      %p130 = por %p128, %p129
      %p132 = scmp.ne.s32.totalorder %s115, %s131
      %p133 = scmp.eq.s32.totalorder %s18, 0
      %p134 = por %p132, %p133
      %s135 = ssub.s32 %s12, %s19
      %p136 = scmp.eq.s32.totalorder %s135, 0
      %s138 = sadd.s32 %s137, 1
      %s139 = scalar_select %p136, %s137, %s138
      %p142 = pneg %p136
      %p143 = scmp.eq.s32.totalorder %s12, 1
      %p144 = por %p142, %p143
      %p145 = scmp.ne.s32.totalorder %s137, %s140
      %p146 = scmp.eq.s32.totalorder %s12, 0
      %p147 = por %p145, %p146
      %p148 = scmp.ne.s32.totalorder %s137, %s140
      %p149 = scmp.eq.s32.totalorder %s17, 1
      %p150 = por %p148, %p149
      %p151 = scmp.ne.s32.totalorder %s140, %s141
      %p152 = scmp.eq.s32.totalorder %s17, 0
      %p153 = por %p151, %p152
      %p154 = scmp.ne.s32.totalorder %s140, %s141
      %p155 = scmp.eq.s32.totalorder %s18, 1
      %p156 = por %p154, %p155
      %p158 = scmp.ne.s32.totalorder %s141, %s157
      %p159 = scmp.eq.s32.totalorder %s18, 0
      %p160 = por %p158, %p159
      %s161 = ssub.s32 %s12, %s19
      %p162 = scmp.eq.s32.totalorder %s161, 0
      %s164 = sadd.s32 %s163, 1
      %s165 = scalar_select %p162, %s163, %s164
      %p168 = pneg %p162
      %p169 = scmp.eq.s32.totalorder %s12, 1
      %p170 = por %p168, %p169
      %p171 = scmp.ne.s32.totalorder %s163, %s166
      %p172 = scmp.eq.s32.totalorder %s12, 0
      %p173 = por %p171, %p172
      %p174 = scmp.ne.s32.totalorder %s163, %s166
      %p175 = scmp.eq.s32.totalorder %s17, 1
      %p176 = por %p174, %p175
      %p177 = scmp.ne.s32.totalorder %s166, %s167
      %p178 = scmp.eq.s32.totalorder %s17, 0
      %p179 = por %p177, %p178
      %p180 = scmp.ne.s32.totalorder %s166, %s167
      %p181 = scmp.eq.s32.totalorder %s18, 1
      %p182 = por %p180, %p181
      %p184 = scmp.ne.s32.totalorder %s167, %s183
      %p185 = scmp.eq.s32.totalorder %s18, 0
      %p186 = por %p184, %p185
      %p187 = scmp.le.s32.totalorder 1, %s12
      %p188 = scmp.lt.s32.totalorder %s12, 3
      %p189 = pnand %p187, %p188
      %p190 = pneg %p189
      // Predicated region
      $region9: #{phi_forward.12} parent=5 // pred_check
        _
      $region10: #{phi_forward.12} parent=5 // pred_check_branch
        %192 = sbr.rel (%p189) target = $region12
      $region11: #{phi_forward.12} parent=5 // pred_region
        %s193 = ssub.s32 %s12, 1
        // Predicated region
        $region13: #{phi_forward.12} parent=11 // pred_check
          %p194 = pneg %p33
        $region14: #{phi_forward.12} parent=11 // pred_check_branch
          %196 = sbr.rel (%p194) target = $region16
        $region15: #{phi_forward.12} parent=11 // pred_region
          _
        $region16: #{phi_forward.12} parent=11 // pred_fallthru
          _
        // Predicated region
        $region17: #{phi_forward.12} parent=11 // pred_check
          %p197 = pneg %p54
        $region18: #{phi_forward.12} parent=11 // pred_check_branch
          %199 = sbr.rel (%p197) target = $region20
        $region19: #{phi_forward.12} parent=11 // pred_region
          _
        $region20: #{phi_forward.12} parent=11 // pred_fallthru
          _
        // Predicated region
        $region21: #{phi_forward.12} parent=11 // pred_check
          %p200 = pneg %p75
        $region22: #{phi_forward.12} parent=11 // pred_check_branch
          %202 = sbr.rel (%p200) target = $region24
        $region23: #{phi_forward.12} parent=11 // pred_region
          _
        $region24: #{phi_forward.12} parent=11 // pred_fallthru
          _
      $region12: #{phi_forward.12} parent=5 // pred_fallthru
        _
      %p203 = scmp.lt.s32.totalorder %s12, 2
      // Predicated region
      $region25: #{phi_forward.12} parent=5 // pred_check
        %p204 = pneg %p203
      $region26: #{phi_forward.12} parent=5 // pred_check_branch
        %206 = sbr.rel (%p204) target = $region28
      $region27: #{phi_forward.12} parent=5 // pred_region
        // Predicated region
        $region29: #{phi_forward.12} parent=27 // pred_check
          %p207 = pneg %p95
        $region30: #{phi_forward.12} parent=27 // pred_check_branch
          %209 = sbr.rel (%p207) target = $region32
        $region31: #{phi_forward.12} parent=27 // pred_region
          %s210 = sand.u32 %s85, 1
          %s211 = sand.u32 %s85, 1
          %s212 = smul.addr %s211, 256
          %s213 = scalar_lea.vmem [#allocation2], %s212
          %s214 = smul.addr %s12, 8
          %s215 = scalar_lea.vmem %s3, %s214
          // Predicated region
          $region33: #{phi_forward.12} parent=31 // pred_check
            _
          $region34: #{phi_forward.12} parent=31 // pred_check_branch
            %217 = sbr.rel (0) target = $region36
          $region35: #{phi_forward.12} parent=31 // pred_region
            // Predicated region
            $region37: #{phi_forward.12} parent=35 // pred_check
              _
            $region38: #{phi_forward.12} parent=35 // pred_check_branch
              %219 = sbr.rel (0) target = $region40
            $region39: #{phi_forward.12} parent=35 // pred_region
              // Predicated region
              $region52: #{phi_forward.12} parent=39 // pred_check
                _
              $region53: #{phi_forward.12} parent=39 // pred_check_branch
                %296 = sbr.rel (0) target = $region55
              $region54: #{phi_forward.12} parent=39 // pred_region
                loop: start=0, step=1, limit=1
                $region56: #{phi_forward.12} parent=54 // loop_pre_header
                  _
                $region57: #{phi_forward.12} parent=54 // loop_header
                  %s298 = sphi 0, %s302
                  %p299 = scmp.ge.s32.totalorder %s298, 1
                  %s303 = sphi %s215, %s215
                  %s304 = sphi %s213, %s213
                $region58: #{phi_forward.12} parent=54 // loop_header_branch
                  %301 = sbr.rel (%p299) target = $region62
                $region59: #{phi_forward.12} parent=54 // loop_body
                  %v305 = vld [vmem:[%s303] sm:$0xff]
                  %306 = vst [vmem:[%s304] sm:$0xff] %v305
                  %v307 = vld [vmem:[%s303 + $0x10] sm:$0xff]
                  %308 = vst [vmem:[%s304 + $0x8] sm:$0xff] %v307
                  %v309 = vld [vmem:[%s303 + $0x20] sm:$0xff]
                  %310 = vst [vmem:[%s304 + $0x10] sm:$0xff] %v309
                  %v311 = vld [vmem:[%s303 + $0x30] sm:$0xff]
                  %312 = vst [vmem:[%s304 + $0x18] sm:$0xff] %v311
                  %v313 = vld [vmem:[%s303 + $0x40] sm:$0xff]
                  %314 = vst [vmem:[%s304 + $0x20] sm:$0xff] %v313
                  %v315 = vld [vmem:[%s303 + $0x50] sm:$0xff]
                  %316 = vst [vmem:[%s304 + $0x28] sm:$0xff] %v315
                  %v317 = vld [vmem:[%s303 + $0x60] sm:$0xff]
                  %318 = vst [vmem:[%s304 + $0x30] sm:$0xff] %v317
                  %v319 = vld [vmem:[%s303 + $0x70] sm:$0xff]
                  %320 = vst [vmem:[%s304 + $0x38] sm:$0xff] %v319
                  %v321 = vld [vmem:[%s303 + $0x80] sm:$0xff]
                  %322 = vst [vmem:[%s304 + $0x40] sm:$0xff] %v321
                  %v323 = vld [vmem:[%s303 + $0x90] sm:$0xff]
                  %324 = vst [vmem:[%s304 + $0x48] sm:$0xff] %v323
                  %v325 = vld [vmem:[%s303 + $0xa0] sm:$0xff]
                  %326 = vst [vmem:[%s304 + $0x50] sm:$0xff] %v325
                  %v327 = vld [vmem:[%s303 + $0xb0] sm:$0xff]
                  %328 = vst [vmem:[%s304 + $0x58] sm:$0xff] %v327
                  %v329 = vld [vmem:[%s303 + $0xc0] sm:$0xff]
                  %330 = vst [vmem:[%s304 + $0x60] sm:$0xff] %v329
                  %v331 = vld [vmem:[%s303 + $0xd0] sm:$0xff]
                  %332 = vst [vmem:[%s304 + $0x68] sm:$0xff] %v331
                  %v333 = vld [vmem:[%s303 + $0xe0] sm:$0xff]
                  %334 = vst [vmem:[%s304 + $0x70] sm:$0xff] %v333
                  %v335 = vld [vmem:[%s303 + $0xf0] sm:$0xff]
                  %336 = vst [vmem:[%s304 + $0x78] sm:$0xff] %v335
                  %v337 = vld [vmem:[%s303 + $0x100] sm:$0xff]
                  %338 = vst [vmem:[%s304 + $0x80] sm:$0xff] %v337
                  %v339 = vld [vmem:[%s303 + $0x110] sm:$0xff]
                  %340 = vst [vmem:[%s304 + $0x88] sm:$0xff] %v339
                  %v341 = vld [vmem:[%s303 + $0x120] sm:$0xff]
                  %342 = vst [vmem:[%s304 + $0x90] sm:$0xff] %v341
                  %v343 = vld [vmem:[%s303 + $0x130] sm:$0xff]
                  %344 = vst [vmem:[%s304 + $0x98] sm:$0xff] %v343
                  %v345 = vld [vmem:[%s303 + $0x140] sm:$0xff]
                  %346 = vst [vmem:[%s304 + $0xa0] sm:$0xff] %v345
                  %v347 = vld [vmem:[%s303 + $0x150] sm:$0xff]
                  %348 = vst [vmem:[%s304 + $0xa8] sm:$0xff] %v347
                  %v349 = vld [vmem:[%s303 + $0x160] sm:$0xff]
                  %350 = vst [vmem:[%s304 + $0xb0] sm:$0xff] %v349
                  %v351 = vld [vmem:[%s303 + $0x170] sm:$0xff]
                  %352 = vst [vmem:[%s304 + $0xb8] sm:$0xff] %v351
                  %v353 = vld [vmem:[%s303 + $0x180] sm:$0xff]
                  %354 = vst [vmem:[%s304 + $0xc0] sm:$0xff] %v353
                  %v355 = vld [vmem:[%s303 + $0x190] sm:$0xff]
                  %356 = vst [vmem:[%s304 + $0xc8] sm:$0xff] %v355
                  %v357 = vld [vmem:[%s303 + $0x1a0] sm:$0xff]
                  %358 = vst [vmem:[%s304 + $0xd0] sm:$0xff] %v357
                  %v359 = vld [vmem:[%s303 + $0x1b0] sm:$0xff]
                  %360 = vst [vmem:[%s304 + $0xd8] sm:$0xff] %v359
                  %v361 = vld [vmem:[%s303 + $0x1c0] sm:$0xff]
                  %362 = vst [vmem:[%s304 + $0xe0] sm:$0xff] %v361
                  %v363 = vld [vmem:[%s303 + $0x1d0] sm:$0xff]
                  %364 = vst [vmem:[%s304 + $0xe8] sm:$0xff] %v363
                  %v365 = vld [vmem:[%s303 + $0x1e0] sm:$0xff]
                  %366 = vst [vmem:[%s304 + $0xf0] sm:$0xff] %v365
                  %v367 = vld [vmem:[%s303 + $0x1f0] sm:$0xff]
                  %368 = vst [vmem:[%s304 + $0xf8] sm:$0xff] %v367
                $region60: #{phi_forward.12} parent=54 // loop_footer
                  %s302 = sadd.s32 1, %s298
                $region61: #{phi_forward.12} parent=54 // loop_footer_branch
                  %297 = sbr.rel target = $region57
                $region62: #{phi_forward.12} parent=54 // loop_exit
                  _
              $region55: #{phi_forward.12} parent=39 // pred_fallthru
                _
              // Predicated region
              $region63: #{phi_forward.12} parent=39 // pred_check
                _
              $region64: #{phi_forward.12} parent=39 // pred_check_branch
                %370 = sbr.rel target = $region66
              $region65: #{phi_forward.12} parent=39 // pred_region
                _
              $region66: #{phi_forward.12} parent=39 // pred_fallthru
                _
            $region40: #{phi_forward.12} parent=35 // pred_fallthru
              _
            // Predicated region
            $region41: #{phi_forward.12} parent=35 // pred_check
              _
            $region42: #{phi_forward.12} parent=35 // pred_check_branch
              %221 = sbr.rel target = $region44
            $region43: #{phi_forward.12} parent=35 // pred_region
              loop: start=0, step=1, limit=1
              $region45: #{phi_forward.12} parent=43 // loop_pre_header
                _
              $region46: #{phi_forward.12} parent=43 // loop_header
                %s224 = sphi 0, %s228
                %p225 = scmp.ge.s32.totalorder %s224, 1
                %s229 = sphi %s215, %s215
                %s230 = sphi %s213, %s213
              $region47: #{phi_forward.12} parent=43 // loop_header_branch
                %227 = sbr.rel (%p225) target = $region51
              $region48: #{phi_forward.12} parent=43 // loop_body
                %v231 = vld [vmem:[%s229] sm:$0xff]
                %232 = vst [vmem:[%s230] sm:$0xff] %v231
                %v233 = vld [vmem:[%s229 + $0x10] sm:$0xff]
                %234 = vst [vmem:[%s230 + $0x8] sm:$0xff] %v233
                %v235 = vld [vmem:[%s229 + $0x20] sm:$0xff]
                %236 = vst [vmem:[%s230 + $0x10] sm:$0xff] %v235
                %v237 = vld [vmem:[%s229 + $0x30] sm:$0xff]
                %238 = vst [vmem:[%s230 + $0x18] sm:$0xff] %v237
                %v239 = vld [vmem:[%s229 + $0x40] sm:$0xff]
                %240 = vst [vmem:[%s230 + $0x20] sm:$0xff] %v239
                %v241 = vld [vmem:[%s229 + $0x50] sm:$0xff]
                %242 = vst [vmem:[%s230 + $0x28] sm:$0xff] %v241
                %v243 = vld [vmem:[%s229 + $0x60] sm:$0xff]
                %244 = vst [vmem:[%s230 + $0x30] sm:$0xff] %v243
                %v245 = vld [vmem:[%s229 + $0x70] sm:$0xff]
                %246 = vst [vmem:[%s230 + $0x38] sm:$0xff] %v245
                %v247 = vld [vmem:[%s229 + $0x80] sm:$0xff]
                %248 = vst [vmem:[%s230 + $0x40] sm:$0xff] %v247
                %v249 = vld [vmem:[%s229 + $0x90] sm:$0xff]
                %250 = vst [vmem:[%s230 + $0x48] sm:$0xff] %v249
                %v251 = vld [vmem:[%s229 + $0xa0] sm:$0xff]
                %252 = vst [vmem:[%s230 + $0x50] sm:$0xff] %v251
                %v253 = vld [vmem:[%s229 + $0xb0] sm:$0xff]
                %254 = vst [vmem:[%s230 + $0x58] sm:$0xff] %v253
                %v255 = vld [vmem:[%s229 + $0xc0] sm:$0xff]
                %256 = vst [vmem:[%s230 + $0x60] sm:$0xff] %v255
                %v257 = vld [vmem:[%s229 + $0xd0] sm:$0xff]
                %258 = vst [vmem:[%s230 + $0x68] sm:$0xff] %v257
                %v259 = vld [vmem:[%s229 + $0xe0] sm:$0xff]
                %260 = vst [vmem:[%s230 + $0x70] sm:$0xff] %v259
                %v261 = vld [vmem:[%s229 + $0xf0] sm:$0xff]
                %262 = vst [vmem:[%s230 + $0x78] sm:$0xff] %v261
                %v263 = vld [vmem:[%s229 + $0x100] sm:$0xff]
                %264 = vst [vmem:[%s230 + $0x80] sm:$0xff] %v263
                %v265 = vld [vmem:[%s229 + $0x110] sm:$0xff]
                %266 = vst [vmem:[%s230 + $0x88] sm:$0xff] %v265
                %v267 = vld [vmem:[%s229 + $0x120] sm:$0xff]
                %268 = vst [vmem:[%s230 + $0x90] sm:$0xff] %v267
                %v269 = vld [vmem:[%s229 + $0x130] sm:$0xff]
                %270 = vst [vmem:[%s230 + $0x98] sm:$0xff] %v269
                %v271 = vld [vmem:[%s229 + $0x140] sm:$0xff]
                %272 = vst [vmem:[%s230 + $0xa0] sm:$0xff] %v271
                %v273 = vld [vmem:[%s229 + $0x150] sm:$0xff]
                %274 = vst [vmem:[%s230 + $0xa8] sm:$0xff] %v273
                %v275 = vld [vmem:[%s229 + $0x160] sm:$0xff]
                %276 = vst [vmem:[%s230 + $0xb0] sm:$0xff] %v275
                %v277 = vld [vmem:[%s229 + $0x170] sm:$0xff]
                %278 = vst [vmem:[%s230 + $0xb8] sm:$0xff] %v277
                %v279 = vld [vmem:[%s229 + $0x180] sm:$0xff]
                %280 = vst [vmem:[%s230 + $0xc0] sm:$0xff] %v279
                %v281 = vld [vmem:[%s229 + $0x190] sm:$0xff]
                %282 = vst [vmem:[%s230 + $0xc8] sm:$0xff] %v281
                %v283 = vld [vmem:[%s229 + $0x1a0] sm:$0xff]
                %284 = vst [vmem:[%s230 + $0xd0] sm:$0xff] %v283
                %v285 = vld [vmem:[%s229 + $0x1b0] sm:$0xff]
                %286 = vst [vmem:[%s230 + $0xd8] sm:$0xff] %v285
                %v287 = vld [vmem:[%s229 + $0x1c0] sm:$0xff]
                %288 = vst [vmem:[%s230 + $0xe0] sm:$0xff] %v287
                %v289 = vld [vmem:[%s229 + $0x1d0] sm:$0xff]
                %290 = vst [vmem:[%s230 + $0xe8] sm:$0xff] %v289
                %v291 = vld [vmem:[%s229 + $0x1e0] sm:$0xff]
                %292 = vst [vmem:[%s230 + $0xf0] sm:$0xff] %v291
                %v293 = vld [vmem:[%s229 + $0x1f0] sm:$0xff]
                %294 = vst [vmem:[%s230 + $0xf8] sm:$0xff] %v293
              $region49: #{phi_forward.12} parent=43 // loop_footer
                %s228 = sadd.s32 1, %s224
              $region50: #{phi_forward.12} parent=43 // loop_footer_branch
                %223 = sbr.rel target = $region46
              $region51: #{phi_forward.12} parent=43 // loop_exit
                _
            $region44: #{phi_forward.12} parent=35 // pred_fallthru
              _
          $region36: #{phi_forward.12} parent=31 // pred_fallthru
            _
          %371 = vnop
        $region32: #{phi_forward.12} parent=27 // pred_fallthru
          _
        // Predicated region
        $region67: #{phi_forward.12} parent=27 // pred_check
          %p372 = pneg %p121
        $region68: #{phi_forward.12} parent=27 // pred_check_branch
          %374 = sbr.rel (%p372) target = $region70
        $region69: #{phi_forward.12} parent=27 // pred_region
          %p375 = scmp.lt.s32.totalorder %s12, 1
          %s376 = scalar_select %p375, %s12, 1
          %s377 = scalar_lea.vmem %s4, %s376
        $region70: #{phi_forward.12} parent=27 // pred_fallthru
          _
        // Predicated region
        $region71: #{phi_forward.12} parent=27 // pred_check
          %p378 = pneg %p147
        $region72: #{phi_forward.12} parent=27 // pred_check_branch
          %380 = sbr.rel (%p378) target = $region74
        $region73: #{phi_forward.12} parent=27 // pred_region
          %p381 = scmp.lt.s32.totalorder %s12, 1
          %s382 = scalar_select %p381, %s12, 1
          %s383 = smul.addr %s382, 8
          %s384 = scalar_lea.vmem %s5, %s383
        $region74: #{phi_forward.12} parent=27 // pred_fallthru
          _
      $region28: #{phi_forward.12} parent=5 // pred_fallthru
        _
      %p385 = scmp.le.s32.totalorder 1, %s12
      %p386 = scmp.lt.s32.totalorder %s12, 3
      %p387 = pnand %p385, %p386
      %p388 = pneg %p387
      // Predicated region
      $region75: #{phi_forward.12} parent=5 // pred_check
        _
      $region76: #{phi_forward.12} parent=5 // pred_check_branch
        %390 = sbr.rel (%p387) target = $region78
      $region77: #{phi_forward.12} parent=5 // pred_region
        %s391 = ssub.s32 %s12, 1
        %s392 = sand.u32 %s88, 1
        %s393 = sand.u32 %s88, 1
        %s394 = smul.addr %s393, 256
        %s395 = scalar_lea.vmem [#allocation2], %s394
        // Predicated region
        $region79: #{phi_forward.12} parent=77 // pred_check
          %p396 = pneg %p101
        $region80: #{phi_forward.12} parent=77 // pred_check_branch
          %398 = sbr.rel (%p396) target = $region82
        $region81: #{phi_forward.12} parent=77 // pred_region
          _
        $region82: #{phi_forward.12} parent=77 // pred_fallthru
          _
        %p399 = pneg %p33
        %p400 = pneg %p30
        %p401 = pneg %p54
        %p402 = pneg %p51
        %p403 = pneg %p75
        %p404 = pneg %p72
        %s405 = sand.u32 %s88, 1
        %s406 = sand.u32 %s88, 1
        %s407 = smul.addr %s406, 256
        %s408 = scalar_lea.vmem [#allocation2], %s407
        %p409 = pneg %p101
        %p410 = pneg %p98
        %p411 = scmp.lt.s32.totalorder %s17, 1
        %s412 = scalar_select %p411, %s17, 1
        %s413 = scalar_lea.vmem %s4, %s412
        %p414 = pneg %p127
        %p415 = pneg %p124
        %p416 = scmp.lt.s32.totalorder %s17, 1
        %s417 = scalar_select %p416, %s17, 1
        %s418 = smul.addr %s417, 8
        %s419 = scalar_lea.vmem %s5, %s418
        %p420 = pneg %p153
        %p421 = pneg %p150
        %p422 = pneg %p179
        %p423 = pneg %p176
        %p424 = scmp.lt.s32.totalorder %s17, 1
        %s425 = scalar_select %p424, %s17, 1
        %s426 = smul.addr %s425, 8
        %s427 = scalar_lea.vmem %s6, %s426
        %p428 = scmp.lt.s32.totalorder %s17, 1
        %s429 = scalar_select %p428, %s17, 1
        %s430 = scalar_lea.vmem %s4, %s429
        %p431 = scmp.lt.s32.totalorder %s17, 1
        %s432 = scalar_select %p431, %s17, 1
        %s433 = smul.addr %s432, 8
        %s434 = scalar_lea.vmem %s5, %s433
        %p435 = scmp.lt.s32.totalorder %s17, 1
        %s436 = scalar_select %p435, %s17, 1
        %s437 = smul.addr %s436, 8
        %s438 = scalar_lea.vmem %s6, %s437
        %v440 = vld [vmem:[%s0] sm:$0xff]
        %v441 = vld [vmem:[%s0 + $0x8] sm:$0xff]
        %v442 = vrot.slane %v440, 4
        %v443 = vadd.f32 %v440, %v442
        %v444 = vrot.slane %v443, 2
        %v445 = vadd.f32 %v443, %v444
        %v446 = vrot.slane %v445, 1
        %v447 = vadd.f32 %v445, %v446
        %v448 = vrot.slane %v441, 4
        %v449 = vadd.f32 %v441, %v448
        %v450 = vrot.slane %v449, 2
        %v451 = vadd.f32 %v449, %v450
        %v452 = vrot.slane %v451, 1
        %v453 = vadd.f32 %v451, %v452
        %v454 = vrcp.pop 8.0
        %v455 = vmul.f32 %v447, %v454
        %v456 = vmul.f32 %v453, %v454
        %v457 = vsub.f32 %v440, %v455
        %v458 = vsub.f32 %v441, %v456
        %v459 = vmul.f32 %v457, %v457
        %v460 = vmul.f32 %v458, %v458
        %v461 = vrot.slane %v459, 4
        %v462 = vadd.f32 %v459, %v461
        %v463 = vrot.slane %v462, 2
        %v464 = vadd.f32 %v462, %v463
        %v465 = vrot.slane %v464, 1
        %v466 = vadd.f32 %v464, %v465
        %v467 = vrot.slane %v460, 4
        %v468 = vadd.f32 %v460, %v467
        %v469 = vrot.slane %v468, 2
        %v470 = vadd.f32 %v468, %v469
        %v471 = vrot.slane %v470, 1
        %v472 = vadd.f32 %v470, %v471
        %v473 = vmul.f32 %v466, %v454
        %v474 = vmul.f32 %v472, %v454
        %v475 = vadd.f32 %v473, 1e-05
        %v476 = vadd.f32 %v474, 1e-05
        %v477 = vrsqrt.pop %v475
        %v478 = vrsqrt.pop %v476
        %v479 = vmul.f32 %v457, %v477
        %v480 = vmul.f32 %v458, %v478
        %v481 = vld [vmem:[%s1] sm:$0x3]
        %v483 = vlaneseq
        %v484 = vshrl.u32 %v483, 7
        %v485 = vsub.s32 0, %v484
        %v486 = vrot.slane %v481, %v485
        %v487 = vlaneseq
        %v488 = vshrl.u32 %v487, 7
        %v489 = vsub.s32 1, %v488
        %v490 = vrot.slane %v481, %v489
        %v493 = vmul.f32 %v479, %v486
        %v494 = vmul.f32 %v480, %v490
        %v495 = vld [vmem:[%s2] sm:$0x3]
        %v497 = vlaneseq
        %v498 = vshrl.u32 %v497, 7
        %v499 = vsub.s32 0, %v498
        %v500 = vrot.slane %v495, %v499
        %v501 = vlaneseq
        %v502 = vshrl.u32 %v501, 7
        %v503 = vsub.s32 1, %v502
        %v504 = vrot.slane %v495, %v503
        %v507 = vadd.f32 %v493, %v500
        %v508 = vadd.f32 %v494, %v504
        %vm509 = vcmp.ge.f32.partialorder %v507, 0.0
        %vm510 = vcmp.ge.f32.partialorder %v508, 0.0
        %v511 = vmul.f32 %v507, 0.2
        %v512 = vmul.f32 %v508, 0.2
        %v513 = vsel %vm509, %v507, %v511
        %v514 = vsel %vm510, %v508, %v512
        %v515 = vld [vmem:[%s395] sm:$0xff]
        %v516 = vld [vmem:[%s395 + $0x8] sm:$0xff]
        %v517 = vld [vmem:[%s395 + $0x10] sm:$0xff]
        %v518 = vld [vmem:[%s395 + $0x18] sm:$0xff]
        %v519 = vld [vmem:[%s395 + $0x20] sm:$0xff]
        %v520 = vld [vmem:[%s395 + $0x28] sm:$0xff]
        %v521 = vld [vmem:[%s395 + $0x30] sm:$0xff]
        %v522 = vld [vmem:[%s395 + $0x38] sm:$0xff]
        %v523 = vld [vmem:[%s395 + $0x40] sm:$0xff]
        %v524 = vld [vmem:[%s395 + $0x48] sm:$0xff]
        %v525 = vld [vmem:[%s395 + $0x50] sm:$0xff]
        %v526 = vld [vmem:[%s395 + $0x58] sm:$0xff]
        %v527 = vld [vmem:[%s395 + $0x60] sm:$0xff]
        %v528 = vld [vmem:[%s395 + $0x68] sm:$0xff]
        %v529 = vld [vmem:[%s395 + $0x70] sm:$0xff]
        %v530 = vld [vmem:[%s395 + $0x78] sm:$0xff]
        %v531 = vld [vmem:[%s395 + $0x80] sm:$0xff]
        %v532 = vld [vmem:[%s395 + $0x88] sm:$0xff]
        %v533 = vld [vmem:[%s395 + $0x90] sm:$0xff]
        %v534 = vld [vmem:[%s395 + $0x98] sm:$0xff]
        %v535 = vld [vmem:[%s395 + $0xa0] sm:$0xff]
        %v536 = vld [vmem:[%s395 + $0xa8] sm:$0xff]
        %v537 = vld [vmem:[%s395 + $0xb0] sm:$0xff]
        %v538 = vld [vmem:[%s395 + $0xb8] sm:$0xff]
        %v539 = vld [vmem:[%s395 + $0xc0] sm:$0xff]
        %v540 = vld [vmem:[%s395 + $0xc8] sm:$0xff]
        %v541 = vld [vmem:[%s395 + $0xd0] sm:$0xff]
        %v542 = vld [vmem:[%s395 + $0xd8] sm:$0xff]
        %v543 = vld [vmem:[%s395 + $0xe0] sm:$0xff]
        %v544 = vld [vmem:[%s395 + $0xe8] sm:$0xff]
        %v545 = vld [vmem:[%s395 + $0xf0] sm:$0xff]
        %v546 = vld [vmem:[%s395 + $0xf8] sm:$0xff]
        %v547 = vpack.c.bf16 %v513, %v513
        %v548 = vpack.c.bf16 %v514, %v514
        %v549 = vpack.c.bf16 %v516, %v515
        %v550 = vpack.c.bf16 %v518, %v517
        %v551 = vpack.c.bf16 %v520, %v519
        %v552 = vpack.c.bf16 %v522, %v521
        %v553 = vpack.c.bf16 %v524, %v523
        %v554 = vpack.c.bf16 %v526, %v525
        %v555 = vpack.c.bf16 %v528, %v527
        %v556 = vpack.c.bf16 %v530, %v529
        %v557 = vpack.c.bf16 %v532, %v531
        %v558 = vpack.c.bf16 %v534, %v533
        %v559 = vpack.c.bf16 %v536, %v535
        %v560 = vpack.c.bf16 %v538, %v537
        %v561 = vpack.c.bf16 %v540, %v539
        %v562 = vpack.c.bf16 %v542, %v541
        %v563 = vpack.c.bf16 %v544, %v543
        %v564 = vpack.c.bf16 %v546, %v545
        %v565 = vld [vmem:[%s430] sm:$0x1]
        %v567 = vlaneseq
        %v568 = vshrl.u32 %v567, 7
        %v569 = vsub.s32 0, %v568
        %v570 = vrot.slane %v565, %v569
        %572 = vmatprep.subr.bf16.mxu0 0
        %573 = vmatpush1.bf16.msra.mxu0 %v549
        %574 = vmatprep.subr.bf16.mxu0 0
        %575 = vmatpush1.bf16.msra.mxu0 %v550
        %576 = vmatprep.subr.bf16.mxu0 0
        %577 = vmatpush1.bf16.msra.mxu0 %v551
        %578 = vmatprep.subr.bf16.mxu0 0
        %579 = vmatpush1.bf16.msra.mxu0 %v552
        %580 = vmatprep.subr.bf16.mxu0 0
        %581 = vmatpush1.bf16.msra.mxu0 %v553
        %582 = vmatprep.subr.bf16.mxu0 0
        %583 = vmatpush1.bf16.msra.mxu0 %v554
        %584 = vmatprep.subr.bf16.mxu0 0
        %585 = vmatpush1.bf16.msra.mxu0 %v555
        %586 = vmatprep.subr.bf16.mxu0 0
        %587 = vmatpush1.bf16.msra.mxu0 %v556
        %588 = vmatprep.subr.bf16.mxu0 0
        %589 = vmatpush1.bf16.msra.mxu0 %v557
        %590 = vmatprep.subr.bf16.mxu0 0
        %591 = vmatpush1.bf16.msra.mxu0 %v558
        %592 = vmatprep.subr.bf16.mxu0 0
        %593 = vmatpush1.bf16.msra.mxu0 %v559
        %594 = vmatprep.subr.bf16.mxu0 0
        %595 = vmatpush1.bf16.msra.mxu0 %v560
        %596 = vmatprep.subr.bf16.mxu0 0
        %597 = vmatpush1.bf16.msra.mxu0 %v561
        %598 = vmatprep.subr.bf16.mxu0 0
        %599 = vmatpush1.bf16.msra.mxu0 %v562
        %600 = vmatprep.subr.bf16.mxu0 0
        %601 = vmatpush1.bf16.msra.mxu0 %v563
        %602 = vmatprep.subr.bf16.mxu0 0
        %603 = vmatpush1.bf16.msra.mxu0 %v564
        %604 = vmatprep.mubr.bf16.mxu0 %v548
        %605 = vmatmul.mubr.bf16.gmra.mrb[0].mxu0 %v547
        %v606 = vpop.f32.mrb[0].mxu0
        %v607 = vadd.f32 %v570, %v606
        %v608 = vpop.f32.mrb[0].mxu0
        %v609 = vpop.f32.mrb[0].mxu0
        %v610 = vpop.f32.mrb[0].mxu0
        %611 = vdwg.mxu0
        %v612 = vld [vmem:[%s434] sm:$0xff]
        %v613 = vadd.f32 %v607, %v612
        %614 = vst [vmem:[%s438] sm:$0xff] %v613
        %p615 = scmp.lt.s32.totalorder %s17, 1
        %s616 = scalar_select %p615, %s17, 1
        %s617 = smul.addr %s616, 8
        %s618 = scalar_lea.vmem %s6, %s617
        // Predicated region
        $region83: #{phi_forward.12} parent=77 // pred_check
          %p619 = pneg %p176
        $region84: #{phi_forward.12} parent=77 // pred_check_branch
          %621 = sbr.rel (%p619) target = $region86
        $region85: #{phi_forward.12} parent=77 // pred_region
          _
        $region86: #{phi_forward.12} parent=77 // pred_fallthru
          _
      $region78: #{phi_forward.12} parent=5 // pred_fallthru
        _
      %p622 = scmp.le.s32.totalorder 2, %s12
      // Predicated region
      $region87: #{phi_forward.12} parent=5 // pred_check
        %p623 = pneg %p622
      $region88: #{phi_forward.12} parent=5 // pred_check_branch
        %625 = sbr.rel (%p623) target = $region90
      $region89: #{phi_forward.12} parent=5 // pred_region
        %s626 = ssub.s32 %s12, 2
        // Predicated region
        $region91: #{phi_forward.12} parent=89 // pred_check
          %p627 = pneg %p182
        $region92: #{phi_forward.12} parent=89 // pred_check_branch
          %629 = sbr.rel (%p627) target = $region94
        $region93: #{phi_forward.12} parent=89 // pred_region
          %p630 = scmp.lt.s32.totalorder %s18, 1
          %s631 = scalar_select %p630, %s18, 1
          %s632 = smul.addr %s631, 8
          %s633 = scalar_lea.vmem %s6, %s632
        $region94: #{phi_forward.12} parent=89 // pred_fallthru
          _
      $region90: #{phi_forward.12} parent=5 // pred_fallthru
        _
    $region6: #{phi_forward.12} parent=1 // loop_footer
      %s16 = sadd.s32 1, %s12
    $region7: #{phi_forward.12} parent=1 // loop_footer_branch
      %11 = sbr.rel target = $region3
    $region8: #{phi_forward.12} parent=1 // loop_exit
      _

// kernel: phi_forward.13
$region0: #{phi_forward.13}
  #allocation0 [shape = 'u32[]', space=smem, size = 0x4, offset = 0x4, fixed_abs, tag = 'smem constant byte address 0x4 - core index']
  #allocation1 [shape = 'u32[144,128]{1,0:T(1,128)}', space=vmem, size = 0x12000, scoped, tag = 'internal scratch']
  %s0 = inlined_call_operand.vmem [shape: f32[8,256], index: 0, kind: input, shape index: {}]
  %s1 = inlined_call_operand.vmem [shape: f32[1,256], index: 1, kind: input, shape index: {}]
  %s2 = inlined_call_operand.vmem [shape: f32[1,256], index: 2, kind: input, shape index: {}]
  %s3 = inlined_call_operand.vmem [shape: f32[256,256], index: 3, kind: input, shape index: {}]
  %s4 = inlined_call_operand.vmem [shape: f32[1,256], index: 4, kind: input, shape index: {}]
  %s5 = inlined_call_operand.vmem [shape: f32[8,256], index: 5, kind: output, shape index: {}]
  %s6 = sld [smem:[#allocation0]]
  $region91: #{phi_forward.13} parent=0
    _
  %s8 = ssub.s32 1, %s6
  %s9 = scalar_select 0, %s8, %s6
  $region1: #{phi_forward.13} parent=0
    #allocation2 [shape = 'u8[262144]{0}', space=vmem, size = 0x40000, scoped, tag = 'input window, operand 3']
    loop: start=0, step=1, limit=4
    $region2: #{phi_forward.13} parent=1 // loop_pre_header
      _
    $region3: #{phi_forward.13} parent=1 // loop_header
      %s11 = sphi 0, %s15
      %p12 = scmp.ge.s32.totalorder %s11, 4
      %s19 = sphi 0, %s19
      %s21 = sphi 0, %s19
      %s22 = sphi 0, %s21
      %s36 = sphi 0, %s22
      %s40 = sphi 0, %s40
      %s42 = sphi 0, %s40
      %s43 = sphi 0, %s42
      %s57 = sphi 0, %s43
      %s61 = sphi 0, %s61
      %s63 = sphi 0, %s61
      %s64 = sphi 0, %s63
      %s78 = sphi 0, %s64
      %s84 = sphi 0, %s86
      %s87 = sphi 0, %s84
      %s88 = sphi 0, %s87
      %s104 = sphi 0, %s88
      %s110 = sphi 0, %s112
      %s113 = sphi 0, %s110
      %s114 = sphi 0, %s113
      %s130 = sphi 0, %s114
      %s136 = sphi 0, %s138
      %s139 = sphi 0, %s136
      %s140 = sphi 0, %s139
      %s156 = sphi 0, %s140
    $region4: #{phi_forward.13} parent=1 // loop_header_branch
      %14 = sbr.rel (%p12) target = $region8
    $region5: #{phi_forward.13} parent=1 // loop_body
      %s16 = ssub.s32 %s11, 1
      %s17 = ssub.s32 %s11, 2
      %s18 = sadd.s32 %s11, 1
      %s20 = sadd.s32 %s19, 1
      %p23 = scmp.eq.s32.totalorder %s11, 1
      %p24 = scmp.ne.s32.totalorder %s19, %s21
      %p25 = scmp.eq.s32.totalorder %s11, 0
      %p26 = por %p24, %p25
      %p27 = scmp.ne.s32.totalorder %s19, %s21
      %p28 = scmp.eq.s32.totalorder %s16, 1
      %p29 = por %p27, %p28
      %p30 = scmp.ne.s32.totalorder %s21, %s22
      %p31 = scmp.eq.s32.totalorder %s16, 0
      %p32 = por %p30, %p31
      %p33 = scmp.ne.s32.totalorder %s21, %s22
      %p34 = scmp.eq.s32.totalorder %s17, 1
      %p35 = por %p33, %p34
      %p37 = scmp.ne.s32.totalorder %s22, %s36
      %p38 = scmp.eq.s32.totalorder %s17, 0
      %p39 = por %p37, %p38
      %s41 = sadd.s32 %s40, 1
      %p44 = scmp.eq.s32.totalorder %s11, 1
      %p45 = scmp.ne.s32.totalorder %s40, %s42
      %p46 = scmp.eq.s32.totalorder %s11, 0
      %p47 = por %p45, %p46
      %p48 = scmp.ne.s32.totalorder %s40, %s42
      %p49 = scmp.eq.s32.totalorder %s16, 1
      %p50 = por %p48, %p49
      %p51 = scmp.ne.s32.totalorder %s42, %s43
      %p52 = scmp.eq.s32.totalorder %s16, 0
      %p53 = por %p51, %p52
      %p54 = scmp.ne.s32.totalorder %s42, %s43
      %p55 = scmp.eq.s32.totalorder %s17, 1
      %p56 = por %p54, %p55
      %p58 = scmp.ne.s32.totalorder %s43, %s57
      %p59 = scmp.eq.s32.totalorder %s17, 0
      %p60 = por %p58, %p59
      %s62 = sadd.s32 %s61, 1
      %p65 = scmp.eq.s32.totalorder %s11, 1
      %p66 = scmp.ne.s32.totalorder %s61, %s63
      %p67 = scmp.eq.s32.totalorder %s11, 0
      %p68 = por %p66, %p67
      %p69 = scmp.ne.s32.totalorder %s61, %s63
      %p70 = scmp.eq.s32.totalorder %s16, 1
      %p71 = por %p69, %p70
      %p72 = scmp.ne.s32.totalorder %s63, %s64
      %p73 = scmp.eq.s32.totalorder %s16, 0
      %p74 = por %p72, %p73
      %p75 = scmp.ne.s32.totalorder %s63, %s64
      %p76 = scmp.eq.s32.totalorder %s17, 1
      %p77 = por %p75, %p76
      %p79 = scmp.ne.s32.totalorder %s64, %s78
      %p80 = scmp.eq.s32.totalorder %s17, 0
      %p81 = por %p79, %p80
      %s82 = ssub.s32 %s11, %s18
      %p83 = scmp.eq.s32.totalorder %s82, 0
      %s85 = sadd.s32 %s84, 1
      %s86 = scalar_select %p83, %s84, %s85
      %p89 = pneg %p83
      %p90 = scmp.eq.s32.totalorder %s11, 1
      %p91 = por %p89, %p90
      %p92 = scmp.ne.s32.totalorder %s84, %s87
      %p93 = scmp.eq.s32.totalorder %s11, 0
      %p94 = por %p92, %p93
      %p95 = scmp.ne.s32.totalorder %s84, %s87
      %p96 = scmp.eq.s32.totalorder %s16, 1
      %p97 = por %p95, %p96
      %p98 = scmp.ne.s32.totalorder %s87, %s88
      %p99 = scmp.eq.s32.totalorder %s16, 0
      %p100 = por %p98, %p99
      %p101 = scmp.ne.s32.totalorder %s87, %s88
      %p102 = scmp.eq.s32.totalorder %s17, 1
      %p103 = por %p101, %p102
      %p105 = scmp.ne.s32.totalorder %s88, %s104
      %p106 = scmp.eq.s32.totalorder %s17, 0
      %p107 = por %p105, %p106
      %s108 = ssub.s32 %s11, %s18
      %p109 = scmp.eq.s32.totalorder %s108, 0
      %s111 = sadd.s32 %s110, 1
      %s112 = scalar_select %p109, %s110, %s111
      %p115 = pneg %p109
      %p116 = scmp.eq.s32.totalorder %s11, 1
      %p117 = por %p115, %p116
      %p118 = scmp.ne.s32.totalorder %s110, %s113
      %p119 = scmp.eq.s32.totalorder %s11, 0
      %p120 = por %p118, %p119
      %p121 = scmp.ne.s32.totalorder %s110, %s113
      %p122 = scmp.eq.s32.totalorder %s16, 1
      %p123 = por %p121, %p122
      %p124 = scmp.ne.s32.totalorder %s113, %s114
      %p125 = scmp.eq.s32.totalorder %s16, 0
      %p126 = por %p124, %p125
      %p127 = scmp.ne.s32.totalorder %s113, %s114
      %p128 = scmp.eq.s32.totalorder %s17, 1
      %p129 = por %p127, %p128
      %p131 = scmp.ne.s32.totalorder %s114, %s130
      %p132 = scmp.eq.s32.totalorder %s17, 0
      %p133 = por %p131, %p132
      %s134 = ssub.s32 %s11, %s18
      %p135 = scmp.eq.s32.totalorder %s134, 0
      %s137 = sadd.s32 %s136, 1
      %s138 = scalar_select %p135, %s136, %s137
      %p141 = pneg %p135
      %p142 = scmp.eq.s32.totalorder %s11, 1
      %p143 = por %p141, %p142
      %p144 = scmp.ne.s32.totalorder %s136, %s139
      %p145 = scmp.eq.s32.totalorder %s11, 0
      %p146 = por %p144, %p145
      %p147 = scmp.ne.s32.totalorder %s136, %s139
      %p148 = scmp.eq.s32.totalorder %s16, 1
      %p149 = por %p147, %p148
      %p150 = scmp.ne.s32.totalorder %s139, %s140
      %p151 = scmp.eq.s32.totalorder %s16, 0
      %p152 = por %p150, %p151
      %p153 = scmp.ne.s32.totalorder %s139, %s140
      %p154 = scmp.eq.s32.totalorder %s17, 1
      %p155 = por %p153, %p154
      %p157 = scmp.ne.s32.totalorder %s140, %s156
      %p158 = scmp.eq.s32.totalorder %s17, 0
      %p159 = por %p157, %p158
      %p160 = scmp.le.s32.totalorder 1, %s11
      %p161 = scmp.lt.s32.totalorder %s11, 3
      %p162 = pnand %p160, %p161
      %p163 = pneg %p162
      // Predicated region
      $region9: #{phi_forward.13} parent=5 // pred_check
        _
      $region10: #{phi_forward.13} parent=5 // pred_check_branch
        %165 = sbr.rel (%p162) target = $region12
      $region11: #{phi_forward.13} parent=5 // pred_region
        %s166 = ssub.s32 %s11, 1
        // Predicated region
        $region13: #{phi_forward.13} parent=11 // pred_check
          %p167 = pneg %p32
        $region14: #{phi_forward.13} parent=11 // pred_check_branch
          %169 = sbr.rel (%p167) target = $region16
        $region15: #{phi_forward.13} parent=11 // pred_region
          _
        $region16: #{phi_forward.13} parent=11 // pred_fallthru
          _
        // Predicated region
        $region17: #{phi_forward.13} parent=11 // pred_check
          %p170 = pneg %p53
        $region18: #{phi_forward.13} parent=11 // pred_check_branch
          %172 = sbr.rel (%p170) target = $region20
        $region19: #{phi_forward.13} parent=11 // pred_region
          _
        $region20: #{phi_forward.13} parent=11 // pred_fallthru
          _
        // Predicated region
        $region21: #{phi_forward.13} parent=11 // pred_check
          %p173 = pneg %p74
        $region22: #{phi_forward.13} parent=11 // pred_check_branch
          %175 = sbr.rel (%p173) target = $region24
        $region23: #{phi_forward.13} parent=11 // pred_region
          _
        $region24: #{phi_forward.13} parent=11 // pred_fallthru
          _
      $region12: #{phi_forward.13} parent=5 // pred_fallthru
        _
      %p176 = scmp.lt.s32.totalorder %s11, 2
      // Predicated region
      $region25: #{phi_forward.13} parent=5 // pred_check
        %p177 = pneg %p176
      $region26: #{phi_forward.13} parent=5 // pred_check_branch
        %179 = sbr.rel (%p177) target = $region28
      $region27: #{phi_forward.13} parent=5 // pred_region
        // Predicated region
        $region29: #{phi_forward.13} parent=27 // pred_check
          %p180 = pneg %p94
        $region30: #{phi_forward.13} parent=27 // pred_check_branch
          %182 = sbr.rel (%p180) target = $region32
        $region31: #{phi_forward.13} parent=27 // pred_region
          %s183 = sand.u32 %s84, 1
          %s184 = sand.u32 %s84, 1
          %s185 = smul.addr %s184, 256
          %s186 = scalar_lea.vmem [#allocation2], %s185
          %s187 = smul.addr %s11, 8
          %s188 = scalar_lea.vmem %s3, %s187
          // Predicated region
          $region33: #{phi_forward.13} parent=31 // pred_check
            _
          $region34: #{phi_forward.13} parent=31 // pred_check_branch
            %190 = sbr.rel (0) target = $region36
          $region35: #{phi_forward.13} parent=31 // pred_region
            // Predicated region
            $region37: #{phi_forward.13} parent=35 // pred_check
              _
            $region38: #{phi_forward.13} parent=35 // pred_check_branch
              %192 = sbr.rel (0) target = $region40
            $region39: #{phi_forward.13} parent=35 // pred_region
              // Predicated region
              $region52: #{phi_forward.13} parent=39 // pred_check
                _
              $region53: #{phi_forward.13} parent=39 // pred_check_branch
                %269 = sbr.rel (0) target = $region55
              $region54: #{phi_forward.13} parent=39 // pred_region
                loop: start=0, step=1, limit=1
                $region56: #{phi_forward.13} parent=54 // loop_pre_header
                  _
                $region57: #{phi_forward.13} parent=54 // loop_header
                  %s271 = sphi 0, %s275
                  %p272 = scmp.ge.s32.totalorder %s271, 1
                  %s276 = sphi %s188, %s188
                  %s277 = sphi %s186, %s186
                $region58: #{phi_forward.13} parent=54 // loop_header_branch
                  %274 = sbr.rel (%p272) target = $region62
                $region59: #{phi_forward.13} parent=54 // loop_body
                  %v278 = vld [vmem:[%s276] sm:$0xff]
                  %279 = vst [vmem:[%s277] sm:$0xff] %v278
                  %v280 = vld [vmem:[%s276 + $0x10] sm:$0xff]
                  %281 = vst [vmem:[%s277 + $0x8] sm:$0xff] %v280
                  %v282 = vld [vmem:[%s276 + $0x20] sm:$0xff]
                  %283 = vst [vmem:[%s277 + $0x10] sm:$0xff] %v282
                  %v284 = vld [vmem:[%s276 + $0x30] sm:$0xff]
                  %285 = vst [vmem:[%s277 + $0x18] sm:$0xff] %v284
                  %v286 = vld [vmem:[%s276 + $0x40] sm:$0xff]
                  %287 = vst [vmem:[%s277 + $0x20] sm:$0xff] %v286
                  %v288 = vld [vmem:[%s276 + $0x50] sm:$0xff]
                  %289 = vst [vmem:[%s277 + $0x28] sm:$0xff] %v288
                  %v290 = vld [vmem:[%s276 + $0x60] sm:$0xff]
                  %291 = vst [vmem:[%s277 + $0x30] sm:$0xff] %v290
                  %v292 = vld [vmem:[%s276 + $0x70] sm:$0xff]
                  %293 = vst [vmem:[%s277 + $0x38] sm:$0xff] %v292
                  %v294 = vld [vmem:[%s276 + $0x80] sm:$0xff]
                  %295 = vst [vmem:[%s277 + $0x40] sm:$0xff] %v294
                  %v296 = vld [vmem:[%s276 + $0x90] sm:$0xff]
                  %297 = vst [vmem:[%s277 + $0x48] sm:$0xff] %v296
                  %v298 = vld [vmem:[%s276 + $0xa0] sm:$0xff]
                  %299 = vst [vmem:[%s277 + $0x50] sm:$0xff] %v298
                  %v300 = vld [vmem:[%s276 + $0xb0] sm:$0xff]
                  %301 = vst [vmem:[%s277 + $0x58] sm:$0xff] %v300
                  %v302 = vld [vmem:[%s276 + $0xc0] sm:$0xff]
                  %303 = vst [vmem:[%s277 + $0x60] sm:$0xff] %v302
                  %v304 = vld [vmem:[%s276 + $0xd0] sm:$0xff]
                  %305 = vst [vmem:[%s277 + $0x68] sm:$0xff] %v304
                  %v306 = vld [vmem:[%s276 + $0xe0] sm:$0xff]
                  %307 = vst [vmem:[%s277 + $0x70] sm:$0xff] %v306
                  %v308 = vld [vmem:[%s276 + $0xf0] sm:$0xff]
                  %309 = vst [vmem:[%s277 + $0x78] sm:$0xff] %v308
                  %v310 = vld [vmem:[%s276 + $0x100] sm:$0xff]
                  %311 = vst [vmem:[%s277 + $0x80] sm:$0xff] %v310
                  %v312 = vld [vmem:[%s276 + $0x110] sm:$0xff]
                  %313 = vst [vmem:[%s277 + $0x88] sm:$0xff] %v312
                  %v314 = vld [vmem:[%s276 + $0x120] sm:$0xff]
                  %315 = vst [vmem:[%s277 + $0x90] sm:$0xff] %v314
                  %v316 = vld [vmem:[%s276 + $0x130] sm:$0xff]
                  %317 = vst [vmem:[%s277 + $0x98] sm:$0xff] %v316
                  %v318 = vld [vmem:[%s276 + $0x140] sm:$0xff]
                  %319 = vst [vmem:[%s277 + $0xa0] sm:$0xff] %v318
                  %v320 = vld [vmem:[%s276 + $0x150] sm:$0xff]
                  %321 = vst [vmem:[%s277 + $0xa8] sm:$0xff] %v320
                  %v322 = vld [vmem:[%s276 + $0x160] sm:$0xff]
                  %323 = vst [vmem:[%s277 + $0xb0] sm:$0xff] %v322
                  %v324 = vld [vmem:[%s276 + $0x170] sm:$0xff]
                  %325 = vst [vmem:[%s277 + $0xb8] sm:$0xff] %v324
                  %v326 = vld [vmem:[%s276 + $0x180] sm:$0xff]
                  %327 = vst [vmem:[%s277 + $0xc0] sm:$0xff] %v326
                  %v328 = vld [vmem:[%s276 + $0x190] sm:$0xff]
                  %329 = vst [vmem:[%s277 + $0xc8] sm:$0xff] %v328
                  %v330 = vld [vmem:[%s276 + $0x1a0] sm:$0xff]
                  %331 = vst [vmem:[%s277 + $0xd0] sm:$0xff] %v330
                  %v332 = vld [vmem:[%s276 + $0x1b0] sm:$0xff]
                  %333 = vst [vmem:[%s277 + $0xd8] sm:$0xff] %v332
                  %v334 = vld [vmem:[%s276 + $0x1c0] sm:$0xff]
                  %335 = vst [vmem:[%s277 + $0xe0] sm:$0xff] %v334
                  %v336 = vld [vmem:[%s276 + $0x1d0] sm:$0xff]
                  %337 = vst [vmem:[%s277 + $0xe8] sm:$0xff] %v336
                  %v338 = vld [vmem:[%s276 + $0x1e0] sm:$0xff]
                  %339 = vst [vmem:[%s277 + $0xf0] sm:$0xff] %v338
                  %v340 = vld [vmem:[%s276 + $0x1f0] sm:$0xff]
                  %341 = vst [vmem:[%s277 + $0xf8] sm:$0xff] %v340
                $region60: #{phi_forward.13} parent=54 // loop_footer
                  %s275 = sadd.s32 1, %s271
                $region61: #{phi_forward.13} parent=54 // loop_footer_branch
                  %270 = sbr.rel target = $region57
                $region62: #{phi_forward.13} parent=54 // loop_exit
                  _
              $region55: #{phi_forward.13} parent=39 // pred_fallthru
                _
              // Predicated region
              $region63: #{phi_forward.13} parent=39 // pred_check
                _
              $region64: #{phi_forward.13} parent=39 // pred_check_branch
                %343 = sbr.rel target = $region66
              $region65: #{phi_forward.13} parent=39 // pred_region
                _
              $region66: #{phi_forward.13} parent=39 // pred_fallthru
                _
            $region40: #{phi_forward.13} parent=35 // pred_fallthru
              _
            // Predicated region
            $region41: #{phi_forward.13} parent=35 // pred_check
              _
            $region42: #{phi_forward.13} parent=35 // pred_check_branch
              %194 = sbr.rel target = $region44
            $region43: #{phi_forward.13} parent=35 // pred_region
              loop: start=0, step=1, limit=1
              $region45: #{phi_forward.13} parent=43 // loop_pre_header
                _
              $region46: #{phi_forward.13} parent=43 // loop_header
                %s197 = sphi 0, %s201
                %p198 = scmp.ge.s32.totalorder %s197, 1
                %s202 = sphi %s188, %s188
                %s203 = sphi %s186, %s186
              $region47: #{phi_forward.13} parent=43 // loop_header_branch
                %200 = sbr.rel (%p198) target = $region51
              $region48: #{phi_forward.13} parent=43 // loop_body
                %v204 = vld [vmem:[%s202] sm:$0xff]
                %205 = vst [vmem:[%s203] sm:$0xff] %v204
                %v206 = vld [vmem:[%s202 + $0x10] sm:$0xff]
                %207 = vst [vmem:[%s203 + $0x8] sm:$0xff] %v206
                %v208 = vld [vmem:[%s202 + $0x20] sm:$0xff]
                %209 = vst [vmem:[%s203 + $0x10] sm:$0xff] %v208
                %v210 = vld [vmem:[%s202 + $0x30] sm:$0xff]
                %211 = vst [vmem:[%s203 + $0x18] sm:$0xff] %v210
                %v212 = vld [vmem:[%s202 + $0x40] sm:$0xff]
                %213 = vst [vmem:[%s203 + $0x20] sm:$0xff] %v212
                %v214 = vld [vmem:[%s202 + $0x50] sm:$0xff]
                %215 = vst [vmem:[%s203 + $0x28] sm:$0xff] %v214
                %v216 = vld [vmem:[%s202 + $0x60] sm:$0xff]
                %217 = vst [vmem:[%s203 + $0x30] sm:$0xff] %v216
                %v218 = vld [vmem:[%s202 + $0x70] sm:$0xff]
                %219 = vst [vmem:[%s203 + $0x38] sm:$0xff] %v218
                %v220 = vld [vmem:[%s202 + $0x80] sm:$0xff]
                %221 = vst [vmem:[%s203 + $0x40] sm:$0xff] %v220
                %v222 = vld [vmem:[%s202 + $0x90] sm:$0xff]
                %223 = vst [vmem:[%s203 + $0x48] sm:$0xff] %v222
                %v224 = vld [vmem:[%s202 + $0xa0] sm:$0xff]
                %225 = vst [vmem:[%s203 + $0x50] sm:$0xff] %v224
                %v226 = vld [vmem:[%s202 + $0xb0] sm:$0xff]
                %227 = vst [vmem:[%s203 + $0x58] sm:$0xff] %v226
                %v228 = vld [vmem:[%s202 + $0xc0] sm:$0xff]
                %229 = vst [vmem:[%s203 + $0x60] sm:$0xff] %v228
                %v230 = vld [vmem:[%s202 + $0xd0] sm:$0xff]
                %231 = vst [vmem:[%s203 + $0x68] sm:$0xff] %v230
                %v232 = vld [vmem:[%s202 + $0xe0] sm:$0xff]
                %233 = vst [vmem:[%s203 + $0x70] sm:$0xff] %v232
                %v234 = vld [vmem:[%s202 + $0xf0] sm:$0xff]
                %235 = vst [vmem:[%s203 + $0x78] sm:$0xff] %v234
                %v236 = vld [vmem:[%s202 + $0x100] sm:$0xff]
                %237 = vst [vmem:[%s203 + $0x80] sm:$0xff] %v236
                %v238 = vld [vmem:[%s202 + $0x110] sm:$0xff]
                %239 = vst [vmem:[%s203 + $0x88] sm:$0xff] %v238
                %v240 = vld [vmem:[%s202 + $0x120] sm:$0xff]
                %241 = vst [vmem:[%s203 + $0x90] sm:$0xff] %v240
                %v242 = vld [vmem:[%s202 + $0x130] sm:$0xff]
                %243 = vst [vmem:[%s203 + $0x98] sm:$0xff] %v242
                %v244 = vld [vmem:[%s202 + $0x140] sm:$0xff]
                %245 = vst [vmem:[%s203 + $0xa0] sm:$0xff] %v244
                %v246 = vld [vmem:[%s202 + $0x150] sm:$0xff]
                %247 = vst [vmem:[%s203 + $0xa8] sm:$0xff] %v246
                %v248 = vld [vmem:[%s202 + $0x160] sm:$0xff]
                %249 = vst [vmem:[%s203 + $0xb0] sm:$0xff] %v248
                %v250 = vld [vmem:[%s202 + $0x170] sm:$0xff]
                %251 = vst [vmem:[%s203 + $0xb8] sm:$0xff] %v250
                %v252 = vld [vmem:[%s202 + $0x180] sm:$0xff]
                %253 = vst [vmem:[%s203 + $0xc0] sm:$0xff] %v252
                %v254 = vld [vmem:[%s202 + $0x190] sm:$0xff]
                %255 = vst [vmem:[%s203 + $0xc8] sm:$0xff] %v254
                %v256 = vld [vmem:[%s202 + $0x1a0] sm:$0xff]
                %257 = vst [vmem:[%s203 + $0xd0] sm:$0xff] %v256
                %v258 = vld [vmem:[%s202 + $0x1b0] sm:$0xff]
                %259 = vst [vmem:[%s203 + $0xd8] sm:$0xff] %v258
                %v260 = vld [vmem:[%s202 + $0x1c0] sm:$0xff]
                %261 = vst [vmem:[%s203 + $0xe0] sm:$0xff] %v260
                %v262 = vld [vmem:[%s202 + $0x1d0] sm:$0xff]
                %263 = vst [vmem:[%s203 + $0xe8] sm:$0xff] %v262
                %v264 = vld [vmem:[%s202 + $0x1e0] sm:$0xff]
                %265 = vst [vmem:[%s203 + $0xf0] sm:$0xff] %v264
                %v266 = vld [vmem:[%s202 + $0x1f0] sm:$0xff]
                %267 = vst [vmem:[%s203 + $0xf8] sm:$0xff] %v266
              $region49: #{phi_forward.13} parent=43 // loop_footer
                %s201 = sadd.s32 1, %s197
              $region50: #{phi_forward.13} parent=43 // loop_footer_branch
                %196 = sbr.rel target = $region46
              $region51: #{phi_forward.13} parent=43 // loop_exit
                _
            $region44: #{phi_forward.13} parent=35 // pred_fallthru
              _
          $region36: #{phi_forward.13} parent=31 // pred_fallthru
            _
          %344 = vnop
        $region32: #{phi_forward.13} parent=27 // pred_fallthru
          _
        // Predicated region
        $region67: #{phi_forward.13} parent=27 // pred_check
          %p345 = pneg %p120
        $region68: #{phi_forward.13} parent=27 // pred_check_branch
          %347 = sbr.rel (%p345) target = $region70
        $region69: #{phi_forward.13} parent=27 // pred_region
          %p348 = scmp.lt.s32.totalorder %s11, 1
          %s349 = scalar_select %p348, %s11, 1
          %s350 = scalar_lea.vmem %s4, %s349
        $region70: #{phi_forward.13} parent=27 // pred_fallthru
          _
      $region28: #{phi_forward.13} parent=5 // pred_fallthru
        _
      %p351 = scmp.le.s32.totalorder 1, %s11
      %p352 = scmp.lt.s32.totalorder %s11, 3
      %p353 = pnand %p351, %p352
      %p354 = pneg %p353
      // Predicated region
      $region71: #{phi_forward.13} parent=5 // pred_check
        _
      $region72: #{phi_forward.13} parent=5 // pred_check_branch
        %356 = sbr.rel (%p353) target = $region74
      $region73: #{phi_forward.13} parent=5 // pred_region
        %s357 = ssub.s32 %s11, 1
        %s358 = sand.u32 %s87, 1
        %s359 = sand.u32 %s87, 1
        %s360 = smul.addr %s359, 256
        %s361 = scalar_lea.vmem [#allocation2], %s360
        // Predicated region
        $region75: #{phi_forward.13} parent=73 // pred_check
          %p362 = pneg %p100
        $region76: #{phi_forward.13} parent=73 // pred_check_branch
          %364 = sbr.rel (%p362) target = $region78
        $region77: #{phi_forward.13} parent=73 // pred_region
          _
        $region78: #{phi_forward.13} parent=73 // pred_fallthru
          _
        %p365 = pneg %p32
        %p366 = pneg %p29
        %p367 = pneg %p53
        %p368 = pneg %p50
        %p369 = pneg %p74
        %p370 = pneg %p71
        %s371 = sand.u32 %s87, 1
        %s372 = sand.u32 %s87, 1
        %s373 = smul.addr %s372, 256
        %s374 = scalar_lea.vmem [#allocation2], %s373
        %p375 = pneg %p100
        %p376 = pneg %p97
        %p377 = scmp.lt.s32.totalorder %s16, 1
        %s378 = scalar_select %p377, %s16, 1
        %s379 = scalar_lea.vmem %s4, %s378
        %p380 = pneg %p126
        %p381 = pneg %p123
        %p382 = pneg %p152
        %p383 = pneg %p149
        %p384 = scmp.lt.s32.totalorder %s16, 1
        %s385 = scalar_select %p384, %s16, 1
        %s386 = smul.addr %s385, 8
        %s387 = scalar_lea.vmem %s5, %s386
        %p388 = scmp.lt.s32.totalorder %s16, 1
        %s389 = scalar_select %p388, %s16, 1
        %s390 = scalar_lea.vmem %s4, %s389
        %p391 = scmp.lt.s32.totalorder %s16, 1
        %s392 = scalar_select %p391, %s16, 1
        %s393 = smul.addr %s392, 8
        %s394 = scalar_lea.vmem %s5, %s393
        %v396 = vld [vmem:[%s0] sm:$0xff]
        %v397 = vld [vmem:[%s0 + $0x8] sm:$0xff]
        %v398 = vrot.slane %v396, 4
        %v399 = vadd.f32 %v396, %v398
        %v400 = vrot.slane %v399, 2
        %v401 = vadd.f32 %v399, %v400
        %v402 = vrot.slane %v401, 1
        %v403 = vadd.f32 %v401, %v402
        %v404 = vrot.slane %v397, 4
        %v405 = vadd.f32 %v397, %v404
        %v406 = vrot.slane %v405, 2
        %v407 = vadd.f32 %v405, %v406
        %v408 = vrot.slane %v407, 1
        %v409 = vadd.f32 %v407, %v408
        %v410 = vrcp.pop 8.0
        %v411 = vmul.f32 %v403, %v410
        %v412 = vmul.f32 %v409, %v410
        %v413 = vsub.f32 %v396, %v411
        %v414 = vsub.f32 %v397, %v412
        %v415 = vmul.f32 %v413, %v413
        %v416 = vmul.f32 %v414, %v414
        %v417 = vrot.slane %v415, 4
        %v418 = vadd.f32 %v415, %v417
        %v419 = vrot.slane %v418, 2
        %v420 = vadd.f32 %v418, %v419
        %v421 = vrot.slane %v420, 1
        %v422 = vadd.f32 %v420, %v421
        %v423 = vrot.slane %v416, 4
        %v424 = vadd.f32 %v416, %v423
        %v425 = vrot.slane %v424, 2
        %v426 = vadd.f32 %v424, %v425
        %v427 = vrot.slane %v426, 1
        %v428 = vadd.f32 %v426, %v427
        %v429 = vmul.f32 %v422, %v410
        %v430 = vmul.f32 %v428, %v410
        %v431 = vadd.f32 %v429, 1e-05
        %v432 = vadd.f32 %v430, 1e-05
        %v433 = vrsqrt.pop %v431
        %v434 = vrsqrt.pop %v432
        %v435 = vmul.f32 %v413, %v433
        %v436 = vmul.f32 %v414, %v434
        %v437 = vld [vmem:[%s1] sm:$0x3]
        %v439 = vlaneseq
        %v440 = vshrl.u32 %v439, 7
        %v441 = vsub.s32 0, %v440
        %v442 = vrot.slane %v437, %v441
        %v443 = vlaneseq
        %v444 = vshrl.u32 %v443, 7
        %v445 = vsub.s32 1, %v444
        %v446 = vrot.slane %v437, %v445
        %v449 = vmul.f32 %v435, %v442
        %v450 = vmul.f32 %v436, %v446
        %v451 = vld [vmem:[%s2] sm:$0x3]
        %v453 = vlaneseq
        %v454 = vshrl.u32 %v453, 7
        %v455 = vsub.s32 0, %v454
        %v456 = vrot.slane %v451, %v455
        %v457 = vlaneseq
        %v458 = vshrl.u32 %v457, 7
        %v459 = vsub.s32 1, %v458
        %v460 = vrot.slane %v451, %v459
        %v463 = vadd.f32 %v449, %v456
        %v464 = vadd.f32 %v450, %v460
        %vm465 = vcmp.ge.f32.partialorder %v463, 0.0
        %vm466 = vcmp.ge.f32.partialorder %v464, 0.0
        %v467 = vmul.f32 %v463, 0.2
        %v468 = vmul.f32 %v464, 0.2
        %v469 = vsel %vm465, %v463, %v467
        %v470 = vsel %vm466, %v464, %v468
        %v471 = vld [vmem:[%s361] sm:$0xff]
        %v472 = vld [vmem:[%s361 + $0x8] sm:$0xff]
        %v473 = vld [vmem:[%s361 + $0x10] sm:$0xff]
        %v474 = vld [vmem:[%s361 + $0x18] sm:$0xff]
        %v475 = vld [vmem:[%s361 + $0x20] sm:$0xff]
        %v476 = vld [vmem:[%s361 + $0x28] sm:$0xff]
        %v477 = vld [vmem:[%s361 + $0x30] sm:$0xff]
        %v478 = vld [vmem:[%s361 + $0x38] sm:$0xff]
        %v479 = vld [vmem:[%s361 + $0x40] sm:$0xff]
        %v480 = vld [vmem:[%s361 + $0x48] sm:$0xff]
        %v481 = vld [vmem:[%s361 + $0x50] sm:$0xff]
        %v482 = vld [vmem:[%s361 + $0x58] sm:$0xff]
        %v483 = vld [vmem:[%s361 + $0x60] sm:$0xff]
        %v484 = vld [vmem:[%s361 + $0x68] sm:$0xff]
        %v485 = vld [vmem:[%s361 + $0x70] sm:$0xff]
        %v486 = vld [vmem:[%s361 + $0x78] sm:$0xff]
        %v487 = vld [vmem:[%s361 + $0x80] sm:$0xff]
        %v488 = vld [vmem:[%s361 + $0x88] sm:$0xff]
        %v489 = vld [vmem:[%s361 + $0x90] sm:$0xff]
        %v490 = vld [vmem:[%s361 + $0x98] sm:$0xff]
        %v491 = vld [vmem:[%s361 + $0xa0] sm:$0xff]
        %v492 = vld [vmem:[%s361 + $0xa8] sm:$0xff]
        %v493 = vld [vmem:[%s361 + $0xb0] sm:$0xff]
        %v494 = vld [vmem:[%s361 + $0xb8] sm:$0xff]
        %v495 = vld [vmem:[%s361 + $0xc0] sm:$0xff]
        %v496 = vld [vmem:[%s361 + $0xc8] sm:$0xff]
        %v497 = vld [vmem:[%s361 + $0xd0] sm:$0xff]
        %v498 = vld [vmem:[%s361 + $0xd8] sm:$0xff]
        %v499 = vld [vmem:[%s361 + $0xe0] sm:$0xff]
        %v500 = vld [vmem:[%s361 + $0xe8] sm:$0xff]
        %v501 = vld [vmem:[%s361 + $0xf0] sm:$0xff]
        %v502 = vld [vmem:[%s361 + $0xf8] sm:$0xff]
        %v503 = vpack.c.bf16 %v469, %v469
        %v504 = vpack.c.bf16 %v470, %v470
        %v505 = vpack.c.bf16 %v472, %v471
        %v506 = vpack.c.bf16 %v474, %v473
        %v507 = vpack.c.bf16 %v476, %v475
        %v508 = vpack.c.bf16 %v478, %v477
        %v509 = vpack.c.bf16 %v480, %v479
        %v510 = vpack.c.bf16 %v482, %v481
        %v511 = vpack.c.bf16 %v484, %v483
        %v512 = vpack.c.bf16 %v486, %v485
        %v513 = vpack.c.bf16 %v488, %v487
        %v514 = vpack.c.bf16 %v490, %v489
        %v515 = vpack.c.bf16 %v492, %v491
        %v516 = vpack.c.bf16 %v494, %v493
        %v517 = vpack.c.bf16 %v496, %v495
        %v518 = vpack.c.bf16 %v498, %v497
        %v519 = vpack.c.bf16 %v500, %v499
        %v520 = vpack.c.bf16 %v502, %v501
        %v521 = vld [vmem:[%s390] sm:$0x1]
        %v523 = vlaneseq
        %v524 = vshrl.u32 %v523, 7
        %v525 = vsub.s32 0, %v524
        %v526 = vrot.slane %v521, %v525
        %528 = vmatprep.subr.bf16.mxu0 0
        %529 = vmatpush1.bf16.msra.mxu0 %v505
        %530 = vmatprep.subr.bf16.mxu0 0
        %531 = vmatpush1.bf16.msra.mxu0 %v506
        %532 = vmatprep.subr.bf16.mxu0 0
        %533 = vmatpush1.bf16.msra.mxu0 %v507
        %534 = vmatprep.subr.bf16.mxu0 0
        %535 = vmatpush1.bf16.msra.mxu0 %v508
        %536 = vmatprep.subr.bf16.mxu0 0
        %537 = vmatpush1.bf16.msra.mxu0 %v509
        %538 = vmatprep.subr.bf16.mxu0 0
        %539 = vmatpush1.bf16.msra.mxu0 %v510
        %540 = vmatprep.subr.bf16.mxu0 0
        %541 = vmatpush1.bf16.msra.mxu0 %v511
        %542 = vmatprep.subr.bf16.mxu0 0
        %543 = vmatpush1.bf16.msra.mxu0 %v512
        %544 = vmatprep.subr.bf16.mxu0 0
        %545 = vmatpush1.bf16.msra.mxu0 %v513
        %546 = vmatprep.subr.bf16.mxu0 0
        %547 = vmatpush1.bf16.msra.mxu0 %v514
        %548 = vmatprep.subr.bf16.mxu0 0
        %549 = vmatpush1.bf16.msra.mxu0 %v515
        %550 = vmatprep.subr.bf16.mxu0 0
        %551 = vmatpush1.bf16.msra.mxu0 %v516
        %552 = vmatprep.subr.bf16.mxu0 0
        %553 = vmatpush1.bf16.msra.mxu0 %v517
        %554 = vmatprep.subr.bf16.mxu0 0
        %555 = vmatpush1.bf16.msra.mxu0 %v518
        %556 = vmatprep.subr.bf16.mxu0 0
        %557 = vmatpush1.bf16.msra.mxu0 %v519
        %558 = vmatprep.subr.bf16.mxu0 0
        %559 = vmatpush1.bf16.msra.mxu0 %v520
        %560 = vmatprep.mubr.bf16.mxu0 %v504
        %561 = vmatmul.mubr.bf16.gmra.mrb[0].mxu0 %v503
        %v562 = vpop.f32.mrb[0].mxu0
        %v563 = vadd.f32 %v526, %v562
        %v564 = vpop.f32.mrb[0].mxu0
        %v565 = vpop.f32.mrb[0].mxu0
        %v566 = vpop.f32.mrb[0].mxu0
        %567 = vdwg.mxu0
        %568 = vst [vmem:[%s394] sm:$0xff] %v563
        %p569 = scmp.lt.s32.totalorder %s16, 1
        %s570 = scalar_select %p569, %s16, 1
        %s571 = smul.addr %s570, 8
        %s572 = scalar_lea.vmem %s5, %s571
        // Predicated region
        $region79: #{phi_forward.13} parent=73 // pred_check
          %p573 = pneg %p149
        $region80: #{phi_forward.13} parent=73 // pred_check_branch
          %575 = sbr.rel (%p573) target = $region82
        $region81: #{phi_forward.13} parent=73 // pred_region
          _
        $region82: #{phi_forward.13} parent=73 // pred_fallthru
          _
      $region74: #{phi_forward.13} parent=5 // pred_fallthru
        _
      %p576 = scmp.le.s32.totalorder 2, %s11
      // Predicated region
      $region83: #{phi_forward.13} parent=5 // pred_check
        %p577 = pneg %p576
      $region84: #{phi_forward.13} parent=5 // pred_check_branch
        %579 = sbr.rel (%p577) target = $region86
      $region85: #{phi_forward.13} parent=5 // pred_region
        %s580 = ssub.s32 %s11, 2
        // Predicated region
        $region87: #{phi_forward.13} parent=85 // pred_check
          %p581 = pneg %p155
        $region88: #{phi_forward.13} parent=85 // pred_check_branch
          %583 = sbr.rel (%p581) target = $region90
        $region89: #{phi_forward.13} parent=85 // pred_region
          %p584 = scmp.lt.s32.totalorder %s17, 1
          %s585 = scalar_select %p584, %s17, 1
          %s586 = smul.addr %s585, 8
          %s587 = scalar_lea.vmem %s5, %s586
        $region90: #{phi_forward.13} parent=85 // pred_fallthru
          _
      $region86: #{phi_forward.13} parent=5 // pred_fallthru
        _
    $region6: #{phi_forward.13} parent=1 // loop_footer
      %s15 = sadd.s32 1, %s11
    $region7: #{phi_forward.13} parent=1 // loop_footer_branch
      %10 = sbr.rel target = $region3
    $region8: #{phi_forward.13} parent=1 // loop_exit
      _

// kernel: phi_forward.19
$region0: #{phi_forward.19}
  #allocation0 [shape = 'u32[]', space=smem, size = 0x4, offset = 0x4, fixed_abs, tag = 'smem constant byte address 0x4 - core index']
  #allocation1 [shape = 'u32[144,128]{1,0:T(1,128)}', space=vmem, size = 0x12000, scoped, tag = 'internal scratch']
  %s0 = inlined_call_operand.vmem [shape: f32[8,256], index: 0, kind: input, shape index: {}]
  %s1 = inlined_call_operand.vmem [shape: f32[256,128], index: 1, kind: input, shape index: {}]
  %s2 = inlined_call_operand.vmem [shape: f32[1,128], index: 2, kind: input, shape index: {}]
  %s3 = inlined_call_operand.hbm [shape: f32[8,128], index: 3, kind: output, shape index: {}]
  %s4 = sld [smem:[#allocation0]]
  $region22: #{phi_forward.19} parent=0
    _
  %s6 = ssub.s32 1, %s4
  %s7 = scalar_select 0, %s6, %s4
  $region1: #{phi_forward.19} parent=0
    #allocation2 [shape = 'u8[4096]{0}', space=vmem, size = 0x1000, scoped, tag = 'output window, operand 0, single buffered']
    #allocation3 [shape = 's32[1]{0}', space=sflag, size = 0x4, scoped, tag = 'scoped memory for phi_forward.19']
    %8 = vsyncpa [#allocation3], 0
    // Predicated region
    $region2: #{phi_forward.19} parent=1 // pred_check
      _
    $region3: #{phi_forward.19} parent=1 // pred_check_branch
      %10 = sbr.rel (0) target = $region5
    $region4: #{phi_forward.19} parent=1 // pred_region
      _
    $region5: #{phi_forward.19} parent=1 // pred_fallthru
      _
    // Predicated region
    $region6: #{phi_forward.19} parent=1 // pred_check
      _
    $region7: #{phi_forward.19} parent=1 // pred_check_branch
      %12 = sbr.rel (0) target = $region9
    $region8: #{phi_forward.19} parent=1 // pred_region
      _
    $region9: #{phi_forward.19} parent=1 // pred_fallthru
      _
    // Predicated region
    $region10: #{phi_forward.19} parent=1 // pred_check
      _
    $region11: #{phi_forward.19} parent=1 // pred_check_branch
      %14 = sbr.rel (0) target = $region13
    $region12: #{phi_forward.19} parent=1 // pred_region
      _
    $region13: #{phi_forward.19} parent=1 // pred_fallthru
      _
    %v16 = vld [vmem:[%s0] sm:$0xff]
    %v17 = vld [vmem:[%s0 + $0x8] sm:$0xff]
    %vm18 = vcmp.ge.f32.partialorder %v16, 0.0
    %vm19 = vcmp.ge.f32.partialorder %v17, 0.0
    %v20 = vmul.f32 %v16, 0.2
    %v21 = vmul.f32 %v17, 0.2
    %v22 = vsel %vm18, %v16, %v20
    %v23 = vsel %vm19, %v17, %v21
    %v24 = vld [vmem:[%s1] sm:$0xff]
    %v25 = vld [vmem:[%s1 + $0x8] sm:$0xff]
    %v26 = vld [vmem:[%s1 + $0x10] sm:$0xff]
    %v27 = vld [vmem:[%s1 + $0x18] sm:$0xff]
    %v28 = vld [vmem:[%s1 + $0x20] sm:$0xff]
    %v29 = vld [vmem:[%s1 + $0x28] sm:$0xff]
    %v30 = vld [vmem:[%s1 + $0x30] sm:$0xff]
    %v31 = vld [vmem:[%s1 + $0x38] sm:$0xff]
    %v32 = vld [vmem:[%s1 + $0x40] sm:$0xff]
    %v33 = vld [vmem:[%s1 + $0x48] sm:$0xff]
    %v34 = vld [vmem:[%s1 + $0x50] sm:$0xff]
    %v35 = vld [vmem:[%s1 + $0x58] sm:$0xff]
    %v36 = vld [vmem:[%s1 + $0x60] sm:$0xff]
    %v37 = vld [vmem:[%s1 + $0x68] sm:$0xff]
    %v38 = vld [vmem:[%s1 + $0x70] sm:$0xff]
    %v39 = vld [vmem:[%s1 + $0x78] sm:$0xff]
    %v40 = vld [vmem:[%s1 + $0x80] sm:$0xff]
    %v41 = vld [vmem:[%s1 + $0x88] sm:$0xff]
    %v42 = vld [vmem:[%s1 + $0x90] sm:$0xff]
    %v43 = vld [vmem:[%s1 + $0x98] sm:$0xff]
    %v44 = vld [vmem:[%s1 + $0xa0] sm:$0xff]
    %v45 = vld [vmem:[%s1 + $0xa8] sm:$0xff]
    %v46 = vld [vmem:[%s1 + $0xb0] sm:$0xff]
    %v47 = vld [vmem:[%s1 + $0xb8] sm:$0xff]
    %v48 = vld [vmem:[%s1 + $0xc0] sm:$0xff]
    %v49 = vld [vmem:[%s1 + $0xc8] sm:$0xff]
    %v50 = vld [vmem:[%s1 + $0xd0] sm:$0xff]
    %v51 = vld [vmem:[%s1 + $0xd8] sm:$0xff]
    %v52 = vld [vmem:[%s1 + $0xe0] sm:$0xff]
    %v53 = vld [vmem:[%s1 + $0xe8] sm:$0xff]
    %v54 = vld [vmem:[%s1 + $0xf0] sm:$0xff]
    %v55 = vld [vmem:[%s1 + $0xf8] sm:$0xff]
    %v56 = vpack.c.bf16 %v22, %v22
    %v57 = vpack.c.bf16 %v23, %v23
    %v58 = vpack.c.bf16 %v25, %v24
    %v59 = vpack.c.bf16 %v27, %v26
    %v60 = vpack.c.bf16 %v29, %v28
    %v61 = vpack.c.bf16 %v31, %v30
    %v62 = vpack.c.bf16 %v33, %v32
    %v63 = vpack.c.bf16 %v35, %v34
    %v64 = vpack.c.bf16 %v37, %v36
    %v65 = vpack.c.bf16 %v39, %v38
    %v66 = vpack.c.bf16 %v41, %v40
    %v67 = vpack.c.bf16 %v43, %v42
    %v68 = vpack.c.bf16 %v45, %v44
    %v69 = vpack.c.bf16 %v47, %v46
    %v70 = vpack.c.bf16 %v49, %v48
    %v71 = vpack.c.bf16 %v51, %v50
    %v72 = vpack.c.bf16 %v53, %v52
    %v73 = vpack.c.bf16 %v55, %v54
    %v74 = vld [vmem:[%s2] sm:$0x1]
    %v76 = vlaneseq
    %v77 = vshrl.u32 %v76, 7
    %v78 = vsub.s32 0, %v77
    %v79 = vrot.slane %v74, %v78
    %81 = vmatprep.subr.bf16.mxu0 0
    %82 = vmatpush1.bf16.msra.mxu0 %v58
    %83 = vmatprep.subr.bf16.mxu0 0
    %84 = vmatpush1.bf16.msra.mxu0 %v59
    %85 = vmatprep.subr.bf16.mxu0 0
    %86 = vmatpush1.bf16.msra.mxu0 %v60
    %87 = vmatprep.subr.bf16.mxu0 0
    %88 = vmatpush1.bf16.msra.mxu0 %v61
    %89 = vmatprep.subr.bf16.mxu0 0
    %90 = vmatpush1.bf16.msra.mxu0 %v62
    %91 = vmatprep.subr.bf16.mxu0 0
    %92 = vmatpush1.bf16.msra.mxu0 %v63
    %93 = vmatprep.subr.bf16.mxu0 0
    %94 = vmatpush1.bf16.msra.mxu0 %v64
    %95 = vmatprep.subr.bf16.mxu0 0
    %96 = vmatpush1.bf16.msra.mxu0 %v65
    %97 = vmatprep.subr.bf16.mxu0 0
    %98 = vmatpush1.bf16.msra.mxu0 %v66
    %99 = vmatprep.subr.bf16.mxu0 0
    %100 = vmatpush1.bf16.msra.mxu0 %v67
    %101 = vmatprep.subr.bf16.mxu0 0
    %102 = vmatpush1.bf16.msra.mxu0 %v68
    %103 = vmatprep.subr.bf16.mxu0 0
    %104 = vmatpush1.bf16.msra.mxu0 %v69
    %105 = vmatprep.subr.bf16.mxu0 0
    %106 = vmatpush1.bf16.msra.mxu0 %v70
    %107 = vmatprep.subr.bf16.mxu0 0
    %108 = vmatpush1.bf16.msra.mxu0 %v71
    %109 = vmatprep.subr.bf16.mxu0 0
    %110 = vmatpush1.bf16.msra.mxu0 %v72
    %111 = vmatprep.subr.bf16.mxu0 0
    %112 = vmatpush1.bf16.msra.mxu0 %v73
    %113 = vmatprep.mubr.bf16.mxu0 %v57
    %114 = vmatmul.mubr.bf16.gmra.mrb[0].mxu0 %v56
    %v115 = vpop.f32.mrb[0].mxu0
    %v116 = vadd.f32 %v79, %v115
    %v117 = vpop.f32.mrb[0].mxu0
    %v118 = vpop.f32.mrb[0].mxu0
    %v119 = vpop.f32.mrb[0].mxu0
    %120 = vdwg.mxu0
    %121 = vst [vmem:[#allocation2] sm:$0xff] %v116
    // Predicated region
    $region14: #{phi_forward.19} parent=1 // pred_check
      _
    $region15: #{phi_forward.19} parent=1 // pred_check_branch
      %123 = sbr.rel (0) target = $region17
    $region16: #{phi_forward.19} parent=1 // pred_region
      %s125 = ssub.s32 128, 128
      %126 = vsyncadd [#allocation3], %s125
      %s128 = sshll.u32 [#allocation2], 4
      %s129 = int_to_ptr.vmem [resolvable:$true] %s128
      %131 = dma.vmem_to_hbm [thread:$0]  %s129, 128, %s3, [#allocation3]
    $region17: #{phi_forward.19} parent=1 // pred_fallthru
      _
    // Predicated region
    $region18: #{phi_forward.19} parent=1 // pred_check
      _
    $region19: #{phi_forward.19} parent=1 // pred_check_branch
      %133 = sbr.rel (0) target = $region21
    $region20: #{phi_forward.19} parent=1 // pred_region
      %134 = dma.done [#allocation3], 128
    $region21: #{phi_forward.19} parent=1 // pred_fallthru
      _
    %135 = vsyncpa [#allocation3], 1

</llo_original>
